<compile_context>
chip_gen: v7x
topology: tpu7x:2x2x1
jax: 0.10.0
libtpu: 0.0.40
codegen_flags: <defaults>
</compile_context>

<pallas_src>
import functools
from typing import Dict

import jax
import jax.numpy as jnp
from jax.experimental import pallas as pl
from jax.experimental.pallas import tpu as pltpu

VMEM_LIMIT = 32 * 1024 * 1024  # fits the v7x 64 MiB budget; plenty elsewhere


# ----------------------------------------------------------------------------
# Fused Pallas kernel: one T5 encoder block + tied LM head, per sequence.
# ----------------------------------------------------------------------------

def _fused_t5_block_kernel(h_ref, ln1_ref, wqkv_ref, wo_ref, ln2_ref,
                           wiff_ref, woff_ref, lnf_ref, lmh_ref, bias_ref,
                           logits_ref, *, num_heads: int, d_head: int,
                           lm_scale: float):
    """One grid step = one sequence.  Blocks:
       h_ref [S, D], weights full-array (VMEM resident), bias [H, S, S],
       logits_ref [S, vocab] (lane-dense, 128-multiple)."""
    inner = num_heads * d_head

    def rmsnorm(x, g_ref):
        # T5 RMSNorm: no mean subtraction, no bias.  f32 math.
        var = jnp.mean(x * x, axis=-1, keepdims=True)
        return x * jax.lax.rsqrt(var + 1e-6) * g_ref[...].astype(jnp.float32)

    h0 = h_ref[...].astype(jnp.float32)                            # [S, D]

    # --- Self-attention sub-block (pre-norm) ---
    xn = rmsnorm(h0, ln1_ref)                                      # [S, D]
    qkv = jnp.dot(xn.astype(wqkv_ref.dtype), wqkv_ref[...],
                  preferred_element_type=jnp.float32)              # [S, 3*inner]
    qkv = qkv.astype(jnp.bfloat16)                                 # MXU operands

    # T5 attention does NOT scale scores by 1/sqrt(d_head).
    head_outs = []
    for hh in range(num_heads):                                    # static unroll
        q_h = qkv[:, hh * d_head:(hh + 1) * d_head]                # [S, Dh]
        k_h = qkv[:, inner + hh * d_head:inner + (hh + 1) * d_head]
        v_h = qkv[:, 2 * inner + hh * d_head:2 * inner + (hh + 1) * d_head]
        # scores = q @ k^T via dot_general contracting the last dims (no
        # explicit transpose materialized).
        s = jax.lax.dot_general(q_h, k_h, (((1,), (1,)), ((), ())),
                                preferred_element_type=jnp.float32)  # [S, S]
        s = s + bias_ref[hh].astype(jnp.float32)
        s = s - jnp.max(s, axis=-1, keepdims=True)
        p = jnp.exp(s)
        p = p / jnp.sum(p, axis=-1, keepdims=True)                 # exact softmax
        o_h = jnp.dot(p.astype(jnp.bfloat16), v_h,
                      preferred_element_type=jnp.float32)          # [S, Dh]
        head_outs.append(o_h)
        # TODO(synk): for realistic S (>=512) switch to a flash-style KV-tiled
        # online-softmax loop; at S=8 the full [S,S] score tensor is fine.
    attn = jnp.concatenate(head_outs, axis=-1)                     # [S, inner]

    h1 = h0 + jnp.dot(attn.astype(wo_ref.dtype), wo_ref[...],
                      preferred_element_type=jnp.float32)          # residual fused

    # --- Feed-forward sub-block (T5 ReLU FFN, no biases) ---
    xn2 = rmsnorm(h1, ln2_ref)
    ff = jnp.dot(xn2.astype(wiff_ref.dtype), wiff_ref[...],
                 preferred_element_type=jnp.float32)               # [S, d_ff]
    ff = jnp.maximum(ff, 0.0)
    h2 = h1 + jnp.dot(ff.astype(woff_ref.dtype), woff_ref[...],
                      preferred_element_type=jnp.float32)          # residual fused

    # --- Final norm + tied-embedding scale + LM head (lane-dense output) ---
    xn3 = rmsnorm(h2, lnf_ref) * lm_scale
    logits = jnp.dot(xn3.astype(lmh_ref.dtype), lmh_ref[...],
                     preferred_element_type=jnp.float32)           # [S, vocab]
    logits_ref[...] = logits.astype(logits_ref.dtype)


# ----------------------------------------------------------------------------
# Model config, params, and jitted forward
# ----------------------------------------------------------------------------

class T5Config:
    vocab_size = 128
    d_model = 32
    num_heads = 4
    d_head = 8
    d_ff = 64
    rel_pos_range = 8  # clipped relative positions in [-8, 7]


def init_params(cfg: T5Config, key):
    ks = jax.random.split(key, 8)
    # Matmul / attention operands stored in bf16 (MXU-friendly); norm gains and
    # relative bias stay f32 (VPU/EUP math is f32).
    nb = lambda k, shape: (0.02 * jax.random.normal(k, shape)).astype(jnp.bfloat16)
    nf = lambda k, shape: (0.02 * jax.random.normal(k, shape)).astype(jnp.float32)
    inner = cfg.num_heads * cfg.d_head
    embed = nb(ks[0], (cfg.vocab_size, cfg.d_model))
    wq = nb(ks[1], (cfg.d_model, inner))
    wk = nb(ks[2], (cfg.d_model, inner))
    wv = nb(ks[3], (cfg.d_model, inner))
    return {
        "embed": embed,
        "w_qkv": jnp.concatenate([wq, wk, wv], axis=1),            # [D, 3*inner]
        "wo": nb(ks[4], (inner, cfg.d_model)),
        "wi_ff": nb(ks[5], (cfg.d_model, cfg.d_ff)),
        "wo_ff": nb(ks[6], (cfg.d_ff, cfg.d_model)),
        # Tied LM head pre-transposed once (materialized copy; fine for
        # inference, wrong if embeddings were ever updated).
        "lm_head": embed.T,                                        # [D, vocab]
        "rel_bias": nf(ks[7], (2 * cfg.rel_pos_range, cfg.num_heads)),
        # Norm gains as (1, D) for a proper (sublane, lane) tile layout.
        "ln1": jnp.ones((1, cfg.d_model), jnp.float32),
        "ln2": jnp.ones((1, cfg.d_model), jnp.float32),
        "ln_f": jnp.ones((1, cfg.d_model), jnp.float32),
    }


def relative_position_bias(params, cfg: T5Config, positions_1d):
    # Simplified T5 relative attention bias: clipped relative distances.
    # Hoisted out of the per-step forward (positions are static per shape).
    # TODO(synk): exact T5 log-spaced bucketing.
    # TODO(synk): assumes every batch row shares identical positions; vLLM's
    # heterogeneous sequences would need per-sequence bias + padding mask.
    rel = positions_1d[None, :] - positions_1d[:, None]            # [S, S]
    rel = jnp.clip(rel, -cfg.rel_pos_range, cfg.rel_pos_range - 1)
    idx = rel + cfg.rel_pos_range
    bias = jnp.take(params["rel_bias"], idx, axis=0)               # [S, S, H]
    return jnp.transpose(bias, (2, 0, 1))                          # [H, S, S]


def make_forward(cfg: T5Config):
    D = cfg.d_model
    H, Dh = cfg.num_heads, cfg.d_head
    inner = H * Dh
    V = cfg.vocab_size
    dff = cfg.d_ff

    kern = functools.partial(_fused_t5_block_kernel,
                             num_heads=H, d_head=Dh,
                             lm_scale=cfg.d_model ** -0.5)

    @jax.jit
    def forward(params, input_ids, rel_bias):
        """input_ids int32 [B, S]; rel_bias f32 [H, S, S]."""
        B, S = input_ids.shape
        T = B * S

        # vllm_util.flatten_tensor + embedding gather (glue, fused by XLA).
        flat_ids = input_ids.reshape(-1)                           # [T]
        h = jnp.take(params["embed"], flat_ids, axis=0)            # [T, D] bf16

        const2 = lambda b: (0, 0)
        logits = pl.pallas_call(
            kern,
            out_shape=jax.ShapeDtypeStruct((T, V), jnp.float32),
            grid=(B,),
            in_specs=[
                pl.BlockSpec((S, D), lambda b: (b, 0)),            # per-seq rows
                pl.BlockSpec((1, D), const2),                      # ln1 gain
                pl.BlockSpec((D, 3 * inner), const2),              # fused QKV
                pl.BlockSpec((inner, D), const2),                  # wo
                pl.BlockSpec((1, D), const2),                      # ln2 gain
                pl.BlockSpec((D, dff), const2),                    # wi_ff
                pl.BlockSpec((dff, D), const2),                    # wo_ff
                pl.BlockSpec((1, D), const2),                      # ln_f gain
                pl.BlockSpec((D, V), const2),                      # lm head
                pl.BlockSpec((H, S, S), lambda b: (0, 0, 0)),      # rel bias
            ],
            out_specs=pl.BlockSpec((S, V), lambda b: (b, 0)),      # lane-dense
            compiler_params=pltpu.CompilerParams(
                dimension_semantics=("parallel",),
                vmem_limit_bytes=VMEM_LIMIT),
        )(h, params["ln1"], params["w_qkv"], params["wo"], params["ln2"],
          params["wi_ff"], params["wo_ff"], params["ln_f"], params["lm_head"],
          rel_bias)

        logits = logits.reshape(B, S, V)
        next_tokens = jnp.argmax(logits[:, -1, :], axis=-1)        # [B]
        return logits, next_tokens

    return forward


def t5_forward(params, cfg: T5Config, forward_fn, input_ids, positions,
               rel_bias) -> Dict[int, dict]:
    B, S = input_ids.shape
    logits, next_tokens = forward_fn(params, input_ids, rel_bias)
    # TODO(synk): emulate the {seq_id: SequenceOutputs} return shape only.
    return {
        int(b): {
            "logits": logits[b],
            "next_token": next_tokens[b],
            "flat_positions": positions.reshape(-1).reshape(B, S)[b],
        }
        for b in range(B)
    }


# ----------------------------------------------------------------------------
# Main
# ----------------------------------------------------------------------------

if __name__ == "__main__":
    cfg = T5Config()
    key = jax.random.PRNGKey(0)
    pkey, ikey = jax.random.split(key)

    params = init_params(cfg, pkey)
    forward_fn = make_forward(cfg)

    B, S = 2, 8
    input_ids = jax.random.randint(ikey, (B, S), 0, cfg.vocab_size,
                                   dtype=jnp.int32)
    positions = jnp.tile(jnp.arange(S, dtype=jnp.int32)[None, :], (B, 1))

    # Hoisted: relative-position bias is static per shape, computed once.
    rel_bias = relative_position_bias(params, cfg, positions[0])   # [H, S, S]

    outputs = t5_forward(params, cfg, forward_fn, input_ids, positions, rel_bias)

    ok = True
    for seq_id, out in outputs.items():
        logits = jax.block_until_ready(out["logits"])
        jax.block_until_ready(out["next_token"])
        ok = ok and bool(jnp.all(jnp.isfinite(logits)))

    if ok:
        print("KERNEL_OK")
</pallas_src>

<mosaic_0001>
module attributes {stable_mosaic.version = 11 : i64} {
  func.func @_fused_t5_block_kernel(%arg0: i32, %arg1: memref<8x32xbf16, #tpu.memory_space<vmem>>, %arg2: memref<1x32xf32, #tpu.memory_space<vmem>>, %arg3: memref<32x96xbf16, #tpu.memory_space<vmem>>, %arg4: memref<32x32xbf16, #tpu.memory_space<vmem>>, %arg5: memref<1x32xf32, #tpu.memory_space<vmem>>, %arg6: memref<32x64xbf16, #tpu.memory_space<vmem>>, %arg7: memref<64x32xbf16, #tpu.memory_space<vmem>>, %arg8: memref<1x32xf32, #tpu.memory_space<vmem>>, %arg9: memref<32x128xbf16, #tpu.memory_space<vmem>>, %arg10: memref<4x8x8xf32, #tpu.memory_space<vmem>>, %arg11: memref<8x128xf32, #tpu.memory_space<vmem>>) attributes {dimension_semantics = [#tpu.dimension_semantics<parallel>], iteration_bounds = array<i64: 2>, scalar_prefetch = 0 : i64, scratch_operands = 0 : i64, tpu.core_type = #tpu.core_type<tc>, window_params = [{transform_indices = @transform_0, window_bounds = array<i64: 8, 32>}, {pipeline_mode = #tpu.pipeline_mode<synchronous>, transform_indices = @transform_1, window_bounds = array<i64: 1, 32>}, {pipeline_mode = #tpu.pipeline_mode<synchronous>, transform_indices = @transform_2, window_bounds = array<i64: 32, 96>}, {pipeline_mode = #tpu.pipeline_mode<synchronous>, transform_indices = @transform_3, window_bounds = array<i64: 32, 32>}, {pipeline_mode = #tpu.pipeline_mode<synchronous>, transform_indices = @transform_4, window_bounds = array<i64: 1, 32>}, {pipeline_mode = #tpu.pipeline_mode<synchronous>, transform_indices = @transform_5, window_bounds = array<i64: 32, 64>}, {pipeline_mode = #tpu.pipeline_mode<synchronous>, transform_indices = @transform_6, window_bounds = array<i64: 64, 32>}, {pipeline_mode = #tpu.pipeline_mode<synchronous>, transform_indices = @transform_7, window_bounds = array<i64: 1, 32>}, {pipeline_mode = #tpu.pipeline_mode<synchronous>, transform_indices = @transform_8, window_bounds = array<i64: 32, 128>}, {pipeline_mode = #tpu.pipeline_mode<synchronous>, transform_indices = @transform_9, window_bounds = array<i64: 4, 8, 8>}, {transform_indices = @transform_10, window_bounds = array<i64: 8, 128>}]} {
    %c0 = arith.constant 0 : index
    %c0_0 = arith.constant 0 : index
    %0 = vector.load %arg1[%c0, %c0_0] : memref<8x32xbf16, #tpu.memory_space<vmem>>, vector<8x32xbf16>
    %1 = arith.extf %0 : vector<8x32xbf16> to vector<8x32xf32>
    %2 = arith.mulf %1, %1 : vector<8x32xf32>
    %cst = arith.constant dense<0.000000e+00> : vector<8xf32>
    %3 = vector.multi_reduction <add>, %2, %cst [1] : vector<8x32xf32> to vector<8xf32>
    %4 = vector.shape_cast %3 : vector<8xf32> to vector<8x1xf32>
    %cst_1 = arith.constant 3.200000e+01 : f32
    %5 = vector.broadcast %cst_1 : f32 to vector<8x1xf32>
    %6 = arith.divf %4, %5 : vector<8x1xf32>
    %cst_2 = arith.constant 9.99999997E-7 : f32
    %7 = vector.broadcast %cst_2 : f32 to vector<8x1xf32>
    %8 = arith.addf %6, %7 : vector<8x1xf32>
    %9 = math.rsqrt %8 : vector<8x1xf32>
    %10 = vector.broadcast %9 : vector<8x1xf32> to vector<8x32xf32>
    %11 = arith.mulf %1, %10 : vector<8x32xf32>
    %c0_3 = arith.constant 0 : index
    %c0_4 = arith.constant 0 : index
    %12 = vector.load %arg2[%c0_3, %c0_4] : memref<1x32xf32, #tpu.memory_space<vmem>>, vector<1x32xf32>
    %13 = vector.broadcast %12 : vector<1x32xf32> to vector<8x32xf32>
    %14 = arith.mulf %11, %13 : vector<8x32xf32>
    %15 = arith.truncf %14 : vector<8x32xf32> to vector<8x32xbf16>
    %c0_5 = arith.constant 0 : index
    %c0_6 = arith.constant 0 : index
    %16 = vector.load %arg3[%c0_5, %c0_6] : memref<32x96xbf16, #tpu.memory_space<vmem>>, vector<32x96xbf16>
    %cst_7 = arith.constant dense<0.000000e+00> : vector<8x96xf32>
    %17 = tpu.matmul %15, %16, %cst_7 {dimension_numbers = #tpu.dot_dimension_numbers<[1], [0], [0], [1], [0, 0, 1, 1], [], []>} : vector<8x32xbf16>, vector<32x96xbf16>, vector<8x96xf32> -> vector<8x96xf32>
    %18 = arith.truncf %17 : vector<8x96xf32> to vector<8x96xbf16>
    %19 = vector.extract_strided_slice %18 {offsets = [0, 0], sizes = [8, 8], strides = [1, 1]} : vector<8x96xbf16> to vector<8x8xbf16>
    %20 = vector.extract_strided_slice %18 {offsets = [0, 32], sizes = [8, 8], strides = [1, 1]} : vector<8x96xbf16> to vector<8x8xbf16>
    %21 = vector.extract_strided_slice %18 {offsets = [0, 64], sizes = [8, 8], strides = [1, 1]} : vector<8x96xbf16> to vector<8x8xbf16>
    %cst_8 = arith.constant dense<0.000000e+00> : vector<8x8xf32>
    %22 = tpu.matmul %19, %20, %cst_8 {dimension_numbers = #tpu.dot_dimension_numbers<[1], [1], [0], [0], [0, 0, 1, 0], [], []>} : vector<8x8xbf16>, vector<8x8xbf16>, vector<8x8xf32> -> vector<8x8xf32>
    %c0_9 = arith.constant 0 : index
    %c0_10 = arith.constant 0 : index
    %c0_11 = arith.constant 0 : index
    %23 = vector.load %arg10[%c0_9, %c0_10, %c0_11] : memref<4x8x8xf32, #tpu.memory_space<vmem>>, vector<1x8x8xf32>
    %24 = vector.shape_cast %23 : vector<1x8x8xf32> to vector<8x8xf32>
    %25 = arith.addf %22, %24 : vector<8x8xf32>
    %cst_12 = arith.constant dense<0xFF800000> : vector<8xf32>
    %26 = vector.multi_reduction <maximumf>, %25, %cst_12 [1] : vector<8x8xf32> to vector<8xf32>
    %27 = vector.shape_cast %26 : vector<8xf32> to vector<8x1xf32>
    %28 = vector.broadcast %27 : vector<8x1xf32> to vector<8x8xf32>
    %29 = arith.subf %25, %28 : vector<8x8xf32>
    %30 = math.exp %29 : vector<8x8xf32>
    %cst_13 = arith.constant dense<0.000000e+00> : vector<8xf32>
    %31 = vector.multi_reduction <add>, %30, %cst_13 [1] : vector<8x8xf32> to vector<8xf32>
    %32 = vector.shape_cast %31 : vector<8xf32> to vector<8x1xf32>
    %33 = vector.broadcast %32 : vector<8x1xf32> to vector<8x8xf32>
    %34 = arith.divf %30, %33 : vector<8x8xf32>
    %35 = arith.truncf %34 : vector<8x8xf32> to vector<8x8xbf16>
    %cst_14 = arith.constant dense<0.000000e+00> : vector<8x8xf32>
    %36 = tpu.matmul %35, %21, %cst_14 {dimension_numbers = #tpu.dot_dimension_numbers<[1], [0], [0], [1], [0, 0, 1, 1], [], []>} : vector<8x8xbf16>, vector<8x8xbf16>, vector<8x8xf32> -> vector<8x8xf32>
    %37 = vector.extract_strided_slice %18 {offsets = [0, 8], sizes = [8, 8], strides = [1, 1]} : vector<8x96xbf16> to vector<8x8xbf16>
    %38 = vector.extract_strided_slice %18 {offsets = [0, 40], sizes = [8, 8], strides = [1, 1]} : vector<8x96xbf16> to vector<8x8xbf16>
    %39 = vector.extract_strided_slice %18 {offsets = [0, 72], sizes = [8, 8], strides = [1, 1]} : vector<8x96xbf16> to vector<8x8xbf16>
    %cst_15 = arith.constant dense<0.000000e+00> : vector<8x8xf32>
    %40 = tpu.matmul %37, %38, %cst_15 {dimension_numbers = #tpu.dot_dimension_numbers<[1], [1], [0], [0], [0, 0, 1, 0], [], []>} : vector<8x8xbf16>, vector<8x8xbf16>, vector<8x8xf32> -> vector<8x8xf32>
    %c1 = arith.constant 1 : index
    %c0_16 = arith.constant 0 : index
    %c0_17 = arith.constant 0 : index
    %41 = vector.load %arg10[%c1, %c0_16, %c0_17] : memref<4x8x8xf32, #tpu.memory_space<vmem>>, vector<1x8x8xf32>
    %42 = vector.shape_cast %41 : vector<1x8x8xf32> to vector<8x8xf32>
    %43 = arith.addf %40, %42 : vector<8x8xf32>
    %cst_18 = arith.constant dense<0xFF800000> : vector<8xf32>
    %44 = vector.multi_reduction <maximumf>, %43, %cst_18 [1] : vector<8x8xf32> to vector<8xf32>
    %45 = vector.shape_cast %44 : vector<8xf32> to vector<8x1xf32>
    %46 = vector.broadcast %45 : vector<8x1xf32> to vector<8x8xf32>
    %47 = arith.subf %43, %46 : vector<8x8xf32>
    %48 = math.exp %47 : vector<8x8xf32>
    %cst_19 = arith.constant dense<0.000000e+00> : vector<8xf32>
    %49 = vector.multi_reduction <add>, %48, %cst_19 [1] : vector<8x8xf32> to vector<8xf32>
    %50 = vector.shape_cast %49 : vector<8xf32> to vector<8x1xf32>
    %51 = vector.broadcast %50 : vector<8x1xf32> to vector<8x8xf32>
    %52 = arith.divf %48, %51 : vector<8x8xf32>
    %53 = arith.truncf %52 : vector<8x8xf32> to vector<8x8xbf16>
    %cst_20 = arith.constant dense<0.000000e+00> : vector<8x8xf32>
    %54 = tpu.matmul %53, %39, %cst_20 {dimension_numbers = #tpu.dot_dimension_numbers<[1], [0], [0], [1], [0, 0, 1, 1], [], []>} : vector<8x8xbf16>, vector<8x8xbf16>, vector<8x8xf32> -> vector<8x8xf32>
    %55 = vector.extract_strided_slice %18 {offsets = [0, 16], sizes = [8, 8], strides = [1, 1]} : vector<8x96xbf16> to vector<8x8xbf16>
    %56 = vector.extract_strided_slice %18 {offsets = [0, 48], sizes = [8, 8], strides = [1, 1]} : vector<8x96xbf16> to vector<8x8xbf16>
    %57 = vector.extract_strided_slice %18 {offsets = [0, 80], sizes = [8, 8], strides = [1, 1]} : vector<8x96xbf16> to vector<8x8xbf16>
    %cst_21 = arith.constant dense<0.000000e+00> : vector<8x8xf32>
    %58 = tpu.matmul %55, %56, %cst_21 {dimension_numbers = #tpu.dot_dimension_numbers<[1], [1], [0], [0], [0, 0, 1, 0], [], []>} : vector<8x8xbf16>, vector<8x8xbf16>, vector<8x8xf32> -> vector<8x8xf32>
    %c2 = arith.constant 2 : index
    %c0_22 = arith.constant 0 : index
    %c0_23 = arith.constant 0 : index
    %59 = vector.load %arg10[%c2, %c0_22, %c0_23] : memref<4x8x8xf32, #tpu.memory_space<vmem>>, vector<1x8x8xf32>
    %60 = vector.shape_cast %59 : vector<1x8x8xf32> to vector<8x8xf32>
    %61 = arith.addf %58, %60 : vector<8x8xf32>
    %cst_24 = arith.constant dense<0xFF800000> : vector<8xf32>
    %62 = vector.multi_reduction <maximumf>, %61, %cst_24 [1] : vector<8x8xf32> to vector<8xf32>
    %63 = vector.shape_cast %62 : vector<8xf32> to vector<8x1xf32>
    %64 = vector.broadcast %63 : vector<8x1xf32> to vector<8x8xf32>
    %65 = arith.subf %61, %64 : vector<8x8xf32>
    %66 = math.exp %65 : vector<8x8xf32>
    %cst_25 = arith.constant dense<0.000000e+00> : vector<8xf32>
    %67 = vector.multi_reduction <add>, %66, %cst_25 [1] : vector<8x8xf32> to vector<8xf32>
    %68 = vector.shape_cast %67 : vector<8xf32> to vector<8x1xf32>
    %69 = vector.broadcast %68 : vector<8x1xf32> to vector<8x8xf32>
    %70 = arith.divf %66, %69 : vector<8x8xf32>
    %71 = arith.truncf %70 : vector<8x8xf32> to vector<8x8xbf16>
    %cst_26 = arith.constant dense<0.000000e+00> : vector<8x8xf32>
    %72 = tpu.matmul %71, %57, %cst_26 {dimension_numbers = #tpu.dot_dimension_numbers<[1], [0], [0], [1], [0, 0, 1, 1], [], []>} : vector<8x8xbf16>, vector<8x8xbf16>, vector<8x8xf32> -> vector<8x8xf32>
    %73 = vector.extract_strided_slice %18 {offsets = [0, 24], sizes = [8, 8], strides = [1, 1]} : vector<8x96xbf16> to vector<8x8xbf16>
    %74 = vector.extract_strided_slice %18 {offsets = [0, 56], sizes = [8, 8], strides = [1, 1]} : vector<8x96xbf16> to vector<8x8xbf16>
    %75 = vector.extract_strided_slice %18 {offsets = [0, 88], sizes = [8, 8], strides = [1, 1]} : vector<8x96xbf16> to vector<8x8xbf16>
    %cst_27 = arith.constant dense<0.000000e+00> : vector<8x8xf32>
    %76 = tpu.matmul %73, %74, %cst_27 {dimension_numbers = #tpu.dot_dimension_numbers<[1], [1], [0], [0], [0, 0, 1, 0], [], []>} : vector<8x8xbf16>, vector<8x8xbf16>, vector<8x8xf32> -> vector<8x8xf32>
    %c3 = arith.constant 3 : index
    %c0_28 = arith.constant 0 : index
    %c0_29 = arith.constant 0 : index
    %77 = vector.load %arg10[%c3, %c0_28, %c0_29] : memref<4x8x8xf32, #tpu.memory_space<vmem>>, vector<1x8x8xf32>
    %78 = vector.shape_cast %77 : vector<1x8x8xf32> to vector<8x8xf32>
    %79 = arith.addf %76, %78 : vector<8x8xf32>
    %cst_30 = arith.constant dense<0xFF800000> : vector<8xf32>
    %80 = vector.multi_reduction <maximumf>, %79, %cst_30 [1] : vector<8x8xf32> to vector<8xf32>
    %81 = vector.shape_cast %80 : vector<8xf32> to vector<8x1xf32>
    %82 = vector.broadcast %81 : vector<8x1xf32> to vector<8x8xf32>
    %83 = arith.subf %79, %82 : vector<8x8xf32>
    %84 = math.exp %83 : vector<8x8xf32>
    %cst_31 = arith.constant dense<0.000000e+00> : vector<8xf32>
    %85 = vector.multi_reduction <add>, %84, %cst_31 [1] : vector<8x8xf32> to vector<8xf32>
    %86 = vector.shape_cast %85 : vector<8xf32> to vector<8x1xf32>
    %87 = vector.broadcast %86 : vector<8x1xf32> to vector<8x8xf32>
    %88 = arith.divf %84, %87 : vector<8x8xf32>
    %89 = arith.truncf %88 : vector<8x8xf32> to vector<8x8xbf16>
    %cst_32 = arith.constant dense<0.000000e+00> : vector<8x8xf32>
    %90 = tpu.matmul %89, %75, %cst_32 {dimension_numbers = #tpu.dot_dimension_numbers<[1], [0], [0], [1], [0, 0, 1, 1], [], []>} : vector<8x8xbf16>, vector<8x8xbf16>, vector<8x8xf32> -> vector<8x8xf32>
    %91 = tpu.concatenate %36, %54, %72, %90 in 1 : vector<8x8xf32>, vector<8x8xf32>, vector<8x8xf32>, vector<8x8xf32> -> vector<8x32xf32>
    %92 = arith.truncf %91 : vector<8x32xf32> to vector<8x32xbf16>
    %c0_33 = arith.constant 0 : index
    %c0_34 = arith.constant 0 : index
    %93 = vector.load %arg4[%c0_33, %c0_34] : memref<32x32xbf16, #tpu.memory_space<vmem>>, vector<32x32xbf16>
    %cst_35 = arith.constant dense<0.000000e+00> : vector<8x32xf32>
    %94 = tpu.matmul %92, %93, %cst_35 {dimension_numbers = #tpu.dot_dimension_numbers<[1], [0], [0], [1], [0, 0, 1, 1], [], []>} : vector<8x32xbf16>, vector<32x32xbf16>, vector<8x32xf32> -> vector<8x32xf32>
    %95 = arith.addf %1, %94 : vector<8x32xf32>
    %96 = arith.mulf %95, %95 : vector<8x32xf32>
    %cst_36 = arith.constant dense<0.000000e+00> : vector<8xf32>
    %97 = vector.multi_reduction <add>, %96, %cst_36 [1] : vector<8x32xf32> to vector<8xf32>
    %98 = vector.shape_cast %97 : vector<8xf32> to vector<8x1xf32>
    %cst_37 = arith.constant 3.200000e+01 : f32
    %99 = vector.broadcast %cst_37 : f32 to vector<8x1xf32>
    %100 = arith.divf %98, %99 : vector<8x1xf32>
    %cst_38 = arith.constant 9.99999997E-7 : f32
    %101 = vector.broadcast %cst_38 : f32 to vector<8x1xf32>
    %102 = arith.addf %100, %101 : vector<8x1xf32>
    %103 = math.rsqrt %102 : vector<8x1xf32>
    %104 = vector.broadcast %103 : vector<8x1xf32> to vector<8x32xf32>
    %105 = arith.mulf %95, %104 : vector<8x32xf32>
    %c0_39 = arith.constant 0 : index
    %c0_40 = arith.constant 0 : index
    %106 = vector.load %arg5[%c0_39, %c0_40] : memref<1x32xf32, #tpu.memory_space<vmem>>, vector<1x32xf32>
    %107 = vector.broadcast %106 : vector<1x32xf32> to vector<8x32xf32>
    %108 = arith.mulf %105, %107 : vector<8x32xf32>
    %109 = arith.truncf %108 : vector<8x32xf32> to vector<8x32xbf16>
    %c0_41 = arith.constant 0 : index
    %c0_42 = arith.constant 0 : index
    %110 = vector.load %arg6[%c0_41, %c0_42] : memref<32x64xbf16, #tpu.memory_space<vmem>>, vector<32x64xbf16>
    %cst_43 = arith.constant dense<0.000000e+00> : vector<8x64xf32>
    %111 = tpu.matmul %109, %110, %cst_43 {dimension_numbers = #tpu.dot_dimension_numbers<[1], [0], [0], [1], [0, 0, 1, 1], [], []>} : vector<8x32xbf16>, vector<32x64xbf16>, vector<8x64xf32> -> vector<8x64xf32>
    %cst_44 = arith.constant 0.000000e+00 : f32
    %112 = vector.broadcast %cst_44 : f32 to vector<8x64xf32>
    %113 = arith.maximumf %111, %112 : vector<8x64xf32>
    %114 = arith.truncf %113 : vector<8x64xf32> to vector<8x64xbf16>
    %c0_45 = arith.constant 0 : index
    %c0_46 = arith.constant 0 : index
    %115 = vector.load %arg7[%c0_45, %c0_46] : memref<64x32xbf16, #tpu.memory_space<vmem>>, vector<64x32xbf16>
    %cst_47 = arith.constant dense<0.000000e+00> : vector<8x32xf32>
    %116 = tpu.matmul %114, %115, %cst_47 {dimension_numbers = #tpu.dot_dimension_numbers<[1], [0], [0], [1], [0, 0, 1, 1], [], []>} : vector<8x64xbf16>, vector<64x32xbf16>, vector<8x32xf32> -> vector<8x32xf32>
    %117 = arith.addf %95, %116 : vector<8x32xf32>
    %118 = arith.mulf %117, %117 : vector<8x32xf32>
    %cst_48 = arith.constant dense<0.000000e+00> : vector<8xf32>
    %119 = vector.multi_reduction <add>, %118, %cst_48 [1] : vector<8x32xf32> to vector<8xf32>
    %120 = vector.shape_cast %119 : vector<8xf32> to vector<8x1xf32>
    %cst_49 = arith.constant 3.200000e+01 : f32
    %121 = vector.broadcast %cst_49 : f32 to vector<8x1xf32>
    %122 = arith.divf %120, %121 : vector<8x1xf32>
    %cst_50 = arith.constant 9.99999997E-7 : f32
    %123 = vector.broadcast %cst_50 : f32 to vector<8x1xf32>
    %124 = arith.addf %122, %123 : vector<8x1xf32>
    %125 = math.rsqrt %124 : vector<8x1xf32>
    %126 = vector.broadcast %125 : vector<8x1xf32> to vector<8x32xf32>
    %127 = arith.mulf %117, %126 : vector<8x32xf32>
    %c0_51 = arith.constant 0 : index
    %c0_52 = arith.constant 0 : index
    %128 = vector.load %arg8[%c0_51, %c0_52] : memref<1x32xf32, #tpu.memory_space<vmem>>, vector<1x32xf32>
    %129 = vector.broadcast %128 : vector<1x32xf32> to vector<8x32xf32>
    %130 = arith.mulf %127, %129 : vector<8x32xf32>
    %cst_53 = arith.constant 0.176776692 : f32
    %131 = vector.broadcast %cst_53 : f32 to vector<8x32xf32>
    %132 = arith.mulf %130, %131 : vector<8x32xf32>
    %133 = arith.truncf %132 : vector<8x32xf32> to vector<8x32xbf16>
    %c0_54 = arith.constant 0 : index
    %c0_55 = arith.constant 0 : index
    %134 = vector.load %arg9[%c0_54, %c0_55] : memref<32x128xbf16, #tpu.memory_space<vmem>>, vector<32x128xbf16>
    %cst_56 = arith.constant dense<0.000000e+00> : vector<8x128xf32>
    %135 = tpu.matmul %133, %134, %cst_56 {dimension_numbers = #tpu.dot_dimension_numbers<[1], [0], [0], [1], [0, 0, 1, 1], [], []>} : vector<8x32xbf16>, vector<32x128xbf16>, vector<8x128xf32> -> vector<8x128xf32>
    %c0_57 = arith.constant 0 : index
    %c0_58 = arith.constant 0 : index
    %136 = vector.load %arg11[%c0_57, %c0_58] : memref<8x128xf32, #tpu.memory_space<vmem>>, vector<8x128xf32>
    tpu.vector_store %arg11[%c0_57, %c0_58], %135 {strides = array<i32>} : memref<8x128xf32, #tpu.memory_space<vmem>>, vector<8x128xf32>,
    return
  }
  func.func @transform_0(%arg0: i32) -> (i32, i32) {
    %c0_i32 = arith.constant 0 : i32
    %c0_i32_0 = arith.constant 0 : i32
    return %arg0, %c0_i32 : i32, i32
  }
  func.func @transform_1(%arg0: i32) -> (i32, i32) {
    %c0_i32 = arith.constant 0 : i32
    %c0_i32_0 = arith.constant 0 : i32
    %c0_i32_1 = arith.constant 0 : i32
    return %c0_i32, %c0_i32_0 : i32, i32
  }
  func.func @transform_2(%arg0: i32) -> (i32, i32) {
    %c0_i32 = arith.constant 0 : i32
    %c0_i32_0 = arith.constant 0 : i32
    %c0_i32_1 = arith.constant 0 : i32
    return %c0_i32, %c0_i32_0 : i32, i32
  }
  func.func @transform_3(%arg0: i32) -> (i32, i32) {
    %c0_i32 = arith.constant 0 : i32
    %c0_i32_0 = arith.constant 0 : i32
    %c0_i32_1 = arith.constant 0 : i32
    return %c0_i32, %c0_i32_0 : i32, i32
  }
  func.func @transform_4(%arg0: i32) -> (i32, i32) {
    %c0_i32 = arith.constant 0 : i32
    %c0_i32_0 = arith.constant 0 : i32
    %c0_i32_1 = arith.constant 0 : i32
    return %c0_i32, %c0_i32_0 : i32, i32
  }
  func.func @transform_5(%arg0: i32) -> (i32, i32) {
    %c0_i32 = arith.constant 0 : i32
    %c0_i32_0 = arith.constant 0 : i32
    %c0_i32_1 = arith.constant 0 : i32
    return %c0_i32, %c0_i32_0 : i32, i32
  }
  func.func @transform_6(%arg0: i32) -> (i32, i32) {
    %c0_i32 = arith.constant 0 : i32
    %c0_i32_0 = arith.constant 0 : i32
    %c0_i32_1 = arith.constant 0 : i32
    return %c0_i32, %c0_i32_0 : i32, i32
  }
  func.func @transform_7(%arg0: i32) -> (i32, i32) {
    %c0_i32 = arith.constant 0 : i32
    %c0_i32_0 = arith.constant 0 : i32
    %c0_i32_1 = arith.constant 0 : i32
    return %c0_i32, %c0_i32_0 : i32, i32
  }
  func.func @transform_8(%arg0: i32) -> (i32, i32) {
    %c0_i32 = arith.constant 0 : i32
    %c0_i32_0 = arith.constant 0 : i32
    %c0_i32_1 = arith.constant 0 : i32
    return %c0_i32, %c0_i32_0 : i32, i32
  }
  func.func @transform_9(%arg0: i32) -> (i32, i32, i32) {
    %c0_i32 = arith.constant 0 : i32
    %c0_i32_0 = arith.constant 0 : i32
    %c0_i32_1 = arith.constant 0 : i32
    %c0_i32_2 = arith.constant 0 : i32
    return %c0_i32, %c0_i32_0, %c0_i32_1 : i32, i32, i32
  }
  func.func @transform_10(%arg0: i32) -> (i32, i32) {
    %c0_i32 = arith.constant 0 : i32
    %c0_i32_0 = arith.constant 0 : i32
    return %arg0, %c0_i32 : i32, i32
  }
}

</mosaic_0001>

<llo_original>
// kernel: forward.1
$region0: #{forward.1}
  #allocation0 [shape = 'u32[]', space=smem, size = 0x4, offset = 0x4, fixed_abs, tag = 'smem constant byte address 0x4 - core index']
  #allocation1 [shape = 'u32[144,128]{1,0:T(1,128)}', space=vmem, size = 0x12000, scoped, tag = 'internal scratch']
  %s0 = inlined_call_operand.vmem [shape: bf16[16,32], index: 0, kind: input, shape index: {}]
  %s1 = inlined_call_operand.vmem [shape: f32[1,32], index: 1, kind: input, shape index: {}]
  %s2 = inlined_call_operand.vmem [shape: bf16[32,96], index: 2, kind: input, shape index: {}]
  %s3 = inlined_call_operand.vmem [shape: bf16[32,32], index: 3, kind: input, shape index: {}]
  %s4 = inlined_call_operand.vmem [shape: f32[1,32], index: 4, kind: input, shape index: {}]
  %s5 = inlined_call_operand.vmem [shape: bf16[32,64], index: 5, kind: input, shape index: {}]
  %s6 = inlined_call_operand.vmem [shape: bf16[64,32], index: 6, kind: input, shape index: {}]
  %s7 = inlined_call_operand.vmem [shape: f32[1,32], index: 7, kind: input, shape index: {}]
  %s8 = inlined_call_operand.vmem [shape: bf16[32,128], index: 8, kind: input, shape index: {}]
  %s9 = inlined_call_operand.vmem [shape: f32[4,8,8], index: 9, kind: input, shape index: {}]
  %s10 = inlined_call_operand.vmem [shape: f32[16,128], index: 10, kind: output, shape index: {}]
  %s11 = sld [smem:[#allocation0]]
  $region73: #{forward.1} parent=0
    _
  %s13 = ssub.s32 1, %s11
  %s14 = scalar_select 0, %s13, %s11
  loop: start=0, step=1, limit=4
  $region2: #{forward.1} parent=0 // loop_pre_header
    _
  $region3: #{forward.1} parent=0 // loop_header
    %s16 = sphi 0, %s20
    %p17 = scmp.ge.s32.totalorder %s16, 4
    %s26 = sphi 0, %s28
    %s29 = sphi 0, %s26
    %s30 = sphi 0, %s29
    %s46 = sphi 0, %s30
    %s50 = sphi 0, %s50
    %s52 = sphi 0, %s50
    %s53 = sphi 0, %s52
    %s67 = sphi 0, %s53
    %s71 = sphi 0, %s71
    %s73 = sphi 0, %s71
    %s74 = sphi 0, %s73
    %s88 = sphi 0, %s74
    %s92 = sphi 0, %s92
    %s94 = sphi 0, %s92
    %s95 = sphi 0, %s94
    %s109 = sphi 0, %s95
    %s113 = sphi 0, %s113
    %s115 = sphi 0, %s113
    %s116 = sphi 0, %s115
    %s130 = sphi 0, %s116
    %s134 = sphi 0, %s134
    %s136 = sphi 0, %s134
    %s137 = sphi 0, %s136
    %s151 = sphi 0, %s137
    %s155 = sphi 0, %s155
    %s157 = sphi 0, %s155
    %s158 = sphi 0, %s157
    %s172 = sphi 0, %s158
    %s176 = sphi 0, %s176
    %s178 = sphi 0, %s176
    %s179 = sphi 0, %s178
    %s193 = sphi 0, %s179
    %s197 = sphi 0, %s197
    %s199 = sphi 0, %s197
    %s200 = sphi 0, %s199
    %s214 = sphi 0, %s200
    %s218 = sphi 0, %s218
    %s220 = sphi 0, %s218
    %s221 = sphi 0, %s220
    %s235 = sphi 0, %s221
    %s241 = sphi 0, %s243
    %s244 = sphi 0, %s241
    %s245 = sphi 0, %s244
    %s261 = sphi 0, %s245
  $region4: #{forward.1} parent=0 // loop_header_branch
    %19 = sbr.rel (%p17) target = $region8
  $region5: #{forward.1} parent=0 // loop_body
    %s21 = ssub.s32 %s16, 1
    %s22 = ssub.s32 %s16, 2
    %s23 = sadd.s32 %s16, 1
    %s24 = ssub.s32 %s16, %s23
    %p25 = scmp.eq.s32.totalorder %s24, 0
    %s27 = sadd.s32 %s26, 1
    %s28 = scalar_select %p25, %s26, %s27
    %p31 = pneg %p25
    %p32 = scmp.eq.s32.totalorder %s16, 1
    %p33 = por %p31, %p32
    %p34 = scmp.ne.s32.totalorder %s26, %s29
    %p35 = scmp.eq.s32.totalorder %s16, 0
    %p36 = por %p34, %p35
    %p37 = scmp.ne.s32.totalorder %s26, %s29
    %p38 = scmp.eq.s32.totalorder %s21, 1
    %p39 = por %p37, %p38
    %p40 = scmp.ne.s32.totalorder %s29, %s30
    %p41 = scmp.eq.s32.totalorder %s21, 0
    %p42 = por %p40, %p41
    %p43 = scmp.ne.s32.totalorder %s29, %s30
    %p44 = scmp.eq.s32.totalorder %s22, 1
    %p45 = por %p43, %p44
    %p47 = scmp.ne.s32.totalorder %s30, %s46
    %p48 = scmp.eq.s32.totalorder %s22, 0
    %p49 = por %p47, %p48
    %s51 = sadd.s32 %s50, 1
    %p54 = scmp.eq.s32.totalorder %s16, 1
    %p55 = scmp.ne.s32.totalorder %s50, %s52
    %p56 = scmp.eq.s32.totalorder %s16, 0
    %p57 = por %p55, %p56
    %p58 = scmp.ne.s32.totalorder %s50, %s52
    %p59 = scmp.eq.s32.totalorder %s21, 1
    %p60 = por %p58, %p59
    %p61 = scmp.ne.s32.totalorder %s52, %s53
    %p62 = scmp.eq.s32.totalorder %s21, 0
    %p63 = por %p61, %p62
    %p64 = scmp.ne.s32.totalorder %s52, %s53
    %p65 = scmp.eq.s32.totalorder %s22, 1
    %p66 = por %p64, %p65
    %p68 = scmp.ne.s32.totalorder %s53, %s67
    %p69 = scmp.eq.s32.totalorder %s22, 0
    %p70 = por %p68, %p69
    %s72 = sadd.s32 %s71, 1
    %p75 = scmp.eq.s32.totalorder %s16, 1
    %p76 = scmp.ne.s32.totalorder %s71, %s73
    %p77 = scmp.eq.s32.totalorder %s16, 0
    %p78 = por %p76, %p77
    %p79 = scmp.ne.s32.totalorder %s71, %s73
    %p80 = scmp.eq.s32.totalorder %s21, 1
    %p81 = por %p79, %p80
    %p82 = scmp.ne.s32.totalorder %s73, %s74
    %p83 = scmp.eq.s32.totalorder %s21, 0
    %p84 = por %p82, %p83
    %p85 = scmp.ne.s32.totalorder %s73, %s74
    %p86 = scmp.eq.s32.totalorder %s22, 1
    %p87 = por %p85, %p86
    %p89 = scmp.ne.s32.totalorder %s74, %s88
    %p90 = scmp.eq.s32.totalorder %s22, 0
    %p91 = por %p89, %p90
    %s93 = sadd.s32 %s92, 1
    %p96 = scmp.eq.s32.totalorder %s16, 1
    %p97 = scmp.ne.s32.totalorder %s92, %s94
    %p98 = scmp.eq.s32.totalorder %s16, 0
    %p99 = por %p97, %p98
    %p100 = scmp.ne.s32.totalorder %s92, %s94
    %p101 = scmp.eq.s32.totalorder %s21, 1
    %p102 = por %p100, %p101
    %p103 = scmp.ne.s32.totalorder %s94, %s95
    %p104 = scmp.eq.s32.totalorder %s21, 0
    %p105 = por %p103, %p104
    %p106 = scmp.ne.s32.totalorder %s94, %s95
    %p107 = scmp.eq.s32.totalorder %s22, 1
    %p108 = por %p106, %p107
    %p110 = scmp.ne.s32.totalorder %s95, %s109
    %p111 = scmp.eq.s32.totalorder %s22, 0
    %p112 = por %p110, %p111
    %s114 = sadd.s32 %s113, 1
    %p117 = scmp.eq.s32.totalorder %s16, 1
    %p118 = scmp.ne.s32.totalorder %s113, %s115
    %p119 = scmp.eq.s32.totalorder %s16, 0
    %p120 = por %p118, %p119
    %p121 = scmp.ne.s32.totalorder %s113, %s115
    %p122 = scmp.eq.s32.totalorder %s21, 1
    %p123 = por %p121, %p122
    %p124 = scmp.ne.s32.totalorder %s115, %s116
    %p125 = scmp.eq.s32.totalorder %s21, 0
    %p126 = por %p124, %p125
    %p127 = scmp.ne.s32.totalorder %s115, %s116
    %p128 = scmp.eq.s32.totalorder %s22, 1
    %p129 = por %p127, %p128
    %p131 = scmp.ne.s32.totalorder %s116, %s130
    %p132 = scmp.eq.s32.totalorder %s22, 0
    %p133 = por %p131, %p132
    %s135 = sadd.s32 %s134, 1
    %p138 = scmp.eq.s32.totalorder %s16, 1
    %p139 = scmp.ne.s32.totalorder %s134, %s136
    %p140 = scmp.eq.s32.totalorder %s16, 0
    %p141 = por %p139, %p140
    %p142 = scmp.ne.s32.totalorder %s134, %s136
    %p143 = scmp.eq.s32.totalorder %s21, 1
    %p144 = por %p142, %p143
    %p145 = scmp.ne.s32.totalorder %s136, %s137
    %p146 = scmp.eq.s32.totalorder %s21, 0
    %p147 = por %p145, %p146
    %p148 = scmp.ne.s32.totalorder %s136, %s137
    %p149 = scmp.eq.s32.totalorder %s22, 1
    %p150 = por %p148, %p149
    %p152 = scmp.ne.s32.totalorder %s137, %s151
    %p153 = scmp.eq.s32.totalorder %s22, 0
    %p154 = por %p152, %p153
    %s156 = sadd.s32 %s155, 1
    %p159 = scmp.eq.s32.totalorder %s16, 1
    %p160 = scmp.ne.s32.totalorder %s155, %s157
    %p161 = scmp.eq.s32.totalorder %s16, 0
    %p162 = por %p160, %p161
    %p163 = scmp.ne.s32.totalorder %s155, %s157
    %p164 = scmp.eq.s32.totalorder %s21, 1
    %p165 = por %p163, %p164
    %p166 = scmp.ne.s32.totalorder %s157, %s158
    %p167 = scmp.eq.s32.totalorder %s21, 0
    %p168 = por %p166, %p167
    %p169 = scmp.ne.s32.totalorder %s157, %s158
    %p170 = scmp.eq.s32.totalorder %s22, 1
    %p171 = por %p169, %p170
    %p173 = scmp.ne.s32.totalorder %s158, %s172
    %p174 = scmp.eq.s32.totalorder %s22, 0
    %p175 = por %p173, %p174
    %s177 = sadd.s32 %s176, 1
    %p180 = scmp.eq.s32.totalorder %s16, 1
    %p181 = scmp.ne.s32.totalorder %s176, %s178
    %p182 = scmp.eq.s32.totalorder %s16, 0
    %p183 = por %p181, %p182
    %p184 = scmp.ne.s32.totalorder %s176, %s178
    %p185 = scmp.eq.s32.totalorder %s21, 1
    %p186 = por %p184, %p185
    %p187 = scmp.ne.s32.totalorder %s178, %s179
    %p188 = scmp.eq.s32.totalorder %s21, 0
    %p189 = por %p187, %p188
    %p190 = scmp.ne.s32.totalorder %s178, %s179
    %p191 = scmp.eq.s32.totalorder %s22, 1
    %p192 = por %p190, %p191
    %p194 = scmp.ne.s32.totalorder %s179, %s193
    %p195 = scmp.eq.s32.totalorder %s22, 0
    %p196 = por %p194, %p195
    %s198 = sadd.s32 %s197, 1
    %p201 = scmp.eq.s32.totalorder %s16, 1
    %p202 = scmp.ne.s32.totalorder %s197, %s199
    %p203 = scmp.eq.s32.totalorder %s16, 0
    %p204 = por %p202, %p203
    %p205 = scmp.ne.s32.totalorder %s197, %s199
    %p206 = scmp.eq.s32.totalorder %s21, 1
    %p207 = por %p205, %p206
    %p208 = scmp.ne.s32.totalorder %s199, %s200
    %p209 = scmp.eq.s32.totalorder %s21, 0
    %p210 = por %p208, %p209
    %p211 = scmp.ne.s32.totalorder %s199, %s200
    %p212 = scmp.eq.s32.totalorder %s22, 1
    %p213 = por %p211, %p212
    %p215 = scmp.ne.s32.totalorder %s200, %s214
    %p216 = scmp.eq.s32.totalorder %s22, 0
    %p217 = por %p215, %p216
    %s219 = sadd.s32 %s218, 1
    %p222 = scmp.eq.s32.totalorder %s16, 1
    %p223 = scmp.ne.s32.totalorder %s218, %s220
    %p224 = scmp.eq.s32.totalorder %s16, 0
    %p225 = por %p223, %p224
    %p226 = scmp.ne.s32.totalorder %s218, %s220
    %p227 = scmp.eq.s32.totalorder %s21, 1
    %p228 = por %p226, %p227
    %p229 = scmp.ne.s32.totalorder %s220, %s221
    %p230 = scmp.eq.s32.totalorder %s21, 0
    %p231 = por %p229, %p230
    %p232 = scmp.ne.s32.totalorder %s220, %s221
    %p233 = scmp.eq.s32.totalorder %s22, 1
    %p234 = por %p232, %p233
    %p236 = scmp.ne.s32.totalorder %s221, %s235
    %p237 = scmp.eq.s32.totalorder %s22, 0
    %p238 = por %p236, %p237
    %s239 = ssub.s32 %s16, %s23
    %p240 = scmp.eq.s32.totalorder %s239, 0
    %s242 = sadd.s32 %s241, 1
    %s243 = scalar_select %p240, %s241, %s242
    %p246 = pneg %p240
    %p247 = scmp.eq.s32.totalorder %s16, 1
    %p248 = por %p246, %p247
    %p249 = scmp.ne.s32.totalorder %s241, %s244
    %p250 = scmp.eq.s32.totalorder %s16, 0
    %p251 = por %p249, %p250
    %p252 = scmp.ne.s32.totalorder %s241, %s244
    %p253 = scmp.eq.s32.totalorder %s21, 1
    %p254 = por %p252, %p253
    %p255 = scmp.ne.s32.totalorder %s244, %s245
    %p256 = scmp.eq.s32.totalorder %s21, 0
    %p257 = por %p255, %p256
    %p258 = scmp.ne.s32.totalorder %s244, %s245
    %p259 = scmp.eq.s32.totalorder %s22, 1
    %p260 = por %p258, %p259
    %p262 = scmp.ne.s32.totalorder %s245, %s261
    %p263 = scmp.eq.s32.totalorder %s22, 0
    %p264 = por %p262, %p263
    %p265 = scmp.le.s32.totalorder 1, %s16
    %p266 = scmp.lt.s32.totalorder %s16, 3
    %p267 = pnand %p265, %p266
    %p268 = pneg %p267
    // Predicated region
    $region9: #{forward.1} parent=5 // pred_check
      _
    $region10: #{forward.1} parent=5 // pred_check_branch
      %270 = sbr.rel (%p267) target = $region12
    $region11: #{forward.1} parent=5 // pred_region
      %s271 = ssub.s32 %s16, 1
      // Predicated region
      $region13: #{forward.1} parent=11 // pred_check
        %p272 = pneg %p63
      $region14: #{forward.1} parent=11 // pred_check_branch
        %274 = sbr.rel (%p272) target = $region16
      $region15: #{forward.1} parent=11 // pred_region
        _
      $region16: #{forward.1} parent=11 // pred_fallthru
        _
      // Predicated region
      $region17: #{forward.1} parent=11 // pred_check
        %p275 = pneg %p84
      $region18: #{forward.1} parent=11 // pred_check_branch
        %277 = sbr.rel (%p275) target = $region20
      $region19: #{forward.1} parent=11 // pred_region
        _
      $region20: #{forward.1} parent=11 // pred_fallthru
        _
      // Predicated region
      $region21: #{forward.1} parent=11 // pred_check
        %p278 = pneg %p105
      $region22: #{forward.1} parent=11 // pred_check_branch
        %280 = sbr.rel (%p278) target = $region24
      $region23: #{forward.1} parent=11 // pred_region
        _
      $region24: #{forward.1} parent=11 // pred_fallthru
        _
      // Predicated region
      $region25: #{forward.1} parent=11 // pred_check
        %p281 = pneg %p126
      $region26: #{forward.1} parent=11 // pred_check_branch
        %283 = sbr.rel (%p281) target = $region28
      $region27: #{forward.1} parent=11 // pred_region
        _
      $region28: #{forward.1} parent=11 // pred_fallthru
        _
      // Predicated region
      $region29: #{forward.1} parent=11 // pred_check
        %p284 = pneg %p147
      $region30: #{forward.1} parent=11 // pred_check_branch
        %286 = sbr.rel (%p284) target = $region32
      $region31: #{forward.1} parent=11 // pred_region
        _
      $region32: #{forward.1} parent=11 // pred_fallthru
        _
      // Predicated region
      $region33: #{forward.1} parent=11 // pred_check
        %p287 = pneg %p168
      $region34: #{forward.1} parent=11 // pred_check_branch
        %289 = sbr.rel (%p287) target = $region36
      $region35: #{forward.1} parent=11 // pred_region
        _
      $region36: #{forward.1} parent=11 // pred_fallthru
        _
      // Predicated region
      $region37: #{forward.1} parent=11 // pred_check
        %p290 = pneg %p189
      $region38: #{forward.1} parent=11 // pred_check_branch
        %292 = sbr.rel (%p290) target = $region40
      $region39: #{forward.1} parent=11 // pred_region
        _
      $region40: #{forward.1} parent=11 // pred_fallthru
        _
      // Predicated region
      $region41: #{forward.1} parent=11 // pred_check
        %p293 = pneg %p210
      $region42: #{forward.1} parent=11 // pred_check_branch
        %295 = sbr.rel (%p293) target = $region44
      $region43: #{forward.1} parent=11 // pred_region
        _
      $region44: #{forward.1} parent=11 // pred_fallthru
        _
      // Predicated region
      $region45: #{forward.1} parent=11 // pred_check
        %p296 = pneg %p231
      $region46: #{forward.1} parent=11 // pred_check_branch
        %298 = sbr.rel (%p296) target = $region48
      $region47: #{forward.1} parent=11 // pred_region
        _
      $region48: #{forward.1} parent=11 // pred_fallthru
        _
    $region12: #{forward.1} parent=5 // pred_fallthru
      _
    %p299 = scmp.lt.s32.totalorder %s16, 2
    // Predicated region
    $region49: #{forward.1} parent=5 // pred_check
      %p300 = pneg %p299
    $region50: #{forward.1} parent=5 // pred_check_branch
      %302 = sbr.rel (%p300) target = $region52
    $region51: #{forward.1} parent=5 // pred_region
      // Predicated region
      $region53: #{forward.1} parent=51 // pred_check
        %p303 = pneg %p36
      $region54: #{forward.1} parent=51 // pred_check_branch
        %305 = sbr.rel (%p303) target = $region56
      $region55: #{forward.1} parent=51 // pred_region
        %p306 = scmp.lt.s32.totalorder %s16, 1
        %s307 = scalar_select %p306, %s16, 1
        %s308 = smul.addr %s307, 4
        %s309 = scalar_lea.vmem %s0, %s308
      $region56: #{forward.1} parent=51 // pred_fallthru
        _
    $region52: #{forward.1} parent=5 // pred_fallthru
      _
    %p310 = scmp.le.s32.totalorder 1, %s16
    %p311 = scmp.lt.s32.totalorder %s16, 3
    %p312 = pnand %p310, %p311
    %p313 = pneg %p312
    // Predicated region
    $region57: #{forward.1} parent=5 // pred_check
      _
    $region58: #{forward.1} parent=5 // pred_check_branch
      %315 = sbr.rel (%p312) target = $region60
    $region59: #{forward.1} parent=5 // pred_region
      %s316 = ssub.s32 %s16, 1
      %p317 = scmp.lt.s32.totalorder %s21, 1
      %s318 = scalar_select %p317, %s21, 1
      %s319 = smul.addr %s318, 4
      %s320 = scalar_lea.vmem %s0, %s319
      %p321 = pneg %p42
      %p322 = pneg %p39
      %p323 = pneg %p63
      %p324 = pneg %p60
      %p325 = pneg %p84
      %p326 = pneg %p81
      %p327 = pneg %p105
      %p328 = pneg %p102
      %p329 = pneg %p126
      %p330 = pneg %p123
      %p331 = pneg %p147
      %p332 = pneg %p144
      %p333 = pneg %p168
      %p334 = pneg %p165
      %p335 = pneg %p189
      %p336 = pneg %p186
      %p337 = pneg %p210
      %p338 = pneg %p207
      %p339 = pneg %p231
      %p340 = pneg %p228
      %p341 = pneg %p257
      %p342 = pneg %p254
      %p343 = scmp.lt.s32.totalorder %s21, 1
      %s344 = scalar_select %p343, %s21, 1
      %s345 = smul.addr %s344, 8
      %s346 = scalar_lea.vmem %s10, %s345
      %p347 = scmp.lt.s32.totalorder %s21, 1
      %s348 = scalar_select %p347, %s21, 1
      %s349 = smul.addr %s348, 4
      %s350 = scalar_lea.vmem %s0, %s349
      %p351 = scmp.lt.s32.totalorder %s21, 1
      %s352 = scalar_select %p351, %s21, 1
      %s353 = smul.addr %s352, 8
      %s354 = scalar_lea.vmem %s10, %s353
      %v356 = vld [vmem:[%s350] sm:$0xf]
      %v357 = vunpack.c.l.bf16 %v356
      %v358 = vmul.f32 %v357, %v357
      %vm359 = vcmask 261120
      %v360 = vsel %vm359, %v358, 0.0
      %361 = vadd.xlane.f32.xlu0 %v360
      %v362 = vpop.xlane.xlu0 %361
      %v363 = vrcp.pop 32.0
      %v364 = vmul.f32 %v362, %v363
      %v365 = vadd.f32 %v364, 1e-06
      %v366 = vrsqrt.pop %v365
      %v367 = vmul.f32 %v357, %v366
      %v368 = vld [vmem:[%s1] sm:$0x1]
      %v370 = vlaneseq
      %v371 = vshrl.u32 %v370, 7
      %v372 = vsub.s32 0, %v371
      %v373 = vrot.slane %v368, %v372
      %v375 = vmul.f32 %v367, %v373
      %v376 = vpack.c.bf16 %v375, %v375
      %v377 = vld [vmem:[%s2] sm:$0xf]
      %v378 = vld [vmem:[%s2 + $0x4] sm:$0xf]
      %v379 = vld [vmem:[%s2 + $0x8] sm:$0xf]
      %v380 = vld [vmem:[%s2 + $0xc] sm:$0xf]
      %v385 = vunpack.c.l.b16 %v377
      %v386 = vunpack.c.l.b16 %v378
      %v387 = vunpack.c.l.b16 %v379
      %v388 = vunpack.c.l.b16 %v380
      %v389 = vpack.c.b16 %v386, %v385
      %v390 = vpack.c.b16 %v388, %v387
      %v394 = vsel %vm359, %v376, 0
      %396 = vmatprep.subr.bf16.mxu0 0
      %397 = vmatpush1.bf16.msra.mxu0 %v389
      %398 = vmatprep.subr.bf16.mxu0 0
      %399 = vmatpush1.bf16.msra.mxu0 %v390
      %400 = vmatprep.subr.bf16.mxu0 0
      %401 = vmatpush1.bf16.msra.mxu0 0
      %402 = vmatprep.subr.bf16.mxu0 0
      %403 = vmatpush1.bf16.msra.mxu0 0
      %404 = vmatprep.subr.bf16.mxu0 0
      %405 = vmatpush1.bf16.msra.mxu0 0
      %406 = vmatprep.subr.bf16.mxu0 0
      %407 = vmatpush1.bf16.msra.mxu0 0
      %408 = vmatprep.subr.bf16.mxu0 0
      %409 = vmatpush1.bf16.msra.mxu0 0
      %410 = vmatprep.subr.bf16.mxu0 0
      %411 = vmatpush1.bf16.msra.mxu0 0
      %412 = vmatprep.subr.bf16.mxu0 0
      %413 = vmatpush1.bf16.msra.mxu0 0
      %414 = vmatprep.subr.bf16.mxu0 0
      %415 = vmatpush1.bf16.msra.mxu0 0
      %416 = vmatprep.subr.bf16.mxu0 0
      %417 = vmatpush1.bf16.msra.mxu0 0
      %418 = vmatprep.subr.bf16.mxu0 0
      %419 = vmatpush1.bf16.msra.mxu0 0
      %420 = vmatprep.subr.bf16.mxu0 0
      %421 = vmatpush1.bf16.msra.mxu0 0
      %422 = vmatprep.subr.bf16.mxu0 0
      %423 = vmatpush1.bf16.msra.mxu0 0
      %424 = vmatprep.subr.bf16.mxu0 0
      %425 = vmatpush1.bf16.msra.mxu0 0
      %426 = vmatprep.subr.bf16.mxu0 0
      %427 = vmatpush1.bf16.msra.mxu0 0
      %428 = vmatprep.mubr.bf16.mxu0 0
      %429 = vmatmul.mubr.bf16.gmra.mrb[0].mxu0 %v394
      %v430 = vpop.f32.mrb[0].mxu0
      %v431 = vadd.f32 0.0, %v430
      %v432 = vpop.f32.mrb[0].mxu0
      %v433 = vpop.f32.mrb[0].mxu0
      %v434 = vpop.f32.mrb[0].mxu0
      %435 = vdwg.mxu0
      %v436 = vpack.c.bf16 %v431, %v431
      %v437 = vld [vmem:[%s9] sm:$0xff]
      %439 = vrot.lane.b32.xlu0 %v436, 96
      %v440 = vpop.permute.xlu0 %439
      %vm441 = vcmask 64512
      %v443 = vsel %vm441, %v436, 0
      %v446 = vsel %vm441, %v440, 0
      %448 = vmatprep.subr.bf16.mxu0 0
      %449 = vmatpush1.bf16.xpose.msra.mxu0 %v446
      %450 = vmatprep.subr.bf16.mxu0 0
      %451 = vmatpush1.bf16.xpose.msra.mxu0 0
      %452 = vmatprep.subr.bf16.mxu0 0
      %453 = vmatpush1.bf16.xpose.msra.mxu0 0
      %454 = vmatprep.subr.bf16.mxu0 0
      %455 = vmatpush1.bf16.xpose.msra.mxu0 0
      %456 = vmatprep.subr.bf16.mxu0 0
      %457 = vmatpush1.bf16.xpose.msra.mxu0 0
      %458 = vmatprep.subr.bf16.mxu0 0
      %459 = vmatpush1.bf16.xpose.msra.mxu0 0
      %460 = vmatprep.subr.bf16.mxu0 0
      %461 = vmatpush1.bf16.xpose.msra.mxu0 0
      %462 = vmatprep.subr.bf16.mxu0 0
      %463 = vmatpush1.bf16.xpose.msra.mxu0 0
      %464 = vmatprep.subr.bf16.mxu0 0
      %465 = vmatpush1.bf16.xpose.msra.mxu0 0
      %466 = vmatprep.subr.bf16.mxu0 0
      %467 = vmatpush1.bf16.xpose.msra.mxu0 0
      %468 = vmatprep.subr.bf16.mxu0 0
      %469 = vmatpush1.bf16.xpose.msra.mxu0 0
      %470 = vmatprep.subr.bf16.mxu0 0
      %471 = vmatpush1.bf16.xpose.msra.mxu0 0
      %472 = vmatprep.subr.bf16.mxu0 0
      %473 = vmatpush1.bf16.xpose.msra.mxu0 0
      %474 = vmatprep.subr.bf16.mxu0 0
      %475 = vmatpush1.bf16.xpose.msra.mxu0 0
      %476 = vmatprep.subr.bf16.mxu0 0
      %477 = vmatpush1.bf16.xpose.msra.mxu0 0
      %478 = vmatprep.subr.bf16.mxu0 0
      %479 = vmatpush1.bf16.xpose.msra.mxu0 0
      %480 = vmatprep.mubr.bf16.mxu0 0
      %481 = vmatmul.mubr.bf16.gmra.mrb[0].mxu0 %v443
      %v482 = vpop.f32.mrb[0].mxu0
      %v483 = vadd.f32 %v437, %v482
      %v484 = vpop.f32.mrb[0].mxu0
      %v485 = vpop.f32.mrb[0].mxu0
      %v486 = vpop.f32.mrb[0].mxu0
      %487 = vdwg.mxu0
      %v488 = vsel %vm441, %v483, -inf
      %489 = vmax.xlane.f32.xlu0 %v488
      %v490 = vpop.xlane.xlu0 %489
      %v491 = vsub.f32 %v483, %v490
      %v492 = vmul.f32 %v491, 1.442695
      %v493 = vpow.pop %v492
      %v494 = vsel %vm441, %v493, 0.0
      %495 = vadd.xlane.f32.xlu0 %v494
      %v496 = vpop.xlane.xlu0 %495
      %v497 = vrcp.pop %v496
      %v498 = vmul.f32 %v493, %v497
      %v499 = vpack.c.bf16 %v498, %v498
      %500 = vrot.lane.b32.xlu0 %v436, 64
      %v501 = vpop.permute.xlu0 %500
      %v503 = vsel %vm441, %v499, 0
      %vm505 = vcmask 1043456
      %v507 = vsel %vm505, %v501, 0
      %509 = vmatprep.subr.bf16.mxu0 0
      %510 = vmatpush1.bf16.msra.mxu0 %v507
      %511 = vmatprep.subr.bf16.mxu0 0
      %512 = vmatpush1.bf16.msra.mxu0 0
      %513 = vmatprep.subr.bf16.mxu0 0
      %514 = vmatpush1.bf16.msra.mxu0 0
      %515 = vmatprep.subr.bf16.mxu0 0
      %516 = vmatpush1.bf16.msra.mxu0 0
      %517 = vmatprep.subr.bf16.mxu0 0
      %518 = vmatpush1.bf16.msra.mxu0 0
      %519 = vmatprep.subr.bf16.mxu0 0
      %520 = vmatpush1.bf16.msra.mxu0 0
      %521 = vmatprep.subr.bf16.mxu0 0
      %522 = vmatpush1.bf16.msra.mxu0 0
      %523 = vmatprep.subr.bf16.mxu0 0
      %524 = vmatpush1.bf16.msra.mxu0 0
      %525 = vmatprep.subr.bf16.mxu0 0
      %526 = vmatpush1.bf16.msra.mxu0 0
      %527 = vmatprep.subr.bf16.mxu0 0
      %528 = vmatpush1.bf16.msra.mxu0 0
      %529 = vmatprep.subr.bf16.mxu0 0
      %530 = vmatpush1.bf16.msra.mxu0 0
      %531 = vmatprep.subr.bf16.mxu0 0
      %532 = vmatpush1.bf16.msra.mxu0 0
      %533 = vmatprep.subr.bf16.mxu0 0
      %534 = vmatpush1.bf16.msra.mxu0 0
      %535 = vmatprep.subr.bf16.mxu0 0
      %536 = vmatpush1.bf16.msra.mxu0 0
      %537 = vmatprep.subr.bf16.mxu0 0
      %538 = vmatpush1.bf16.msra.mxu0 0
      %539 = vmatprep.subr.bf16.mxu0 0
      %540 = vmatpush1.bf16.msra.mxu0 0
      %541 = vmatprep.mubr.bf16.mxu0 0
      %542 = vmatmul.mubr.bf16.gmra.mrb[0].mxu0 %v503
      %v543 = vpop.f32.mrb[0].mxu0
      %v544 = vadd.f32 0.0, %v543
      %v545 = vpop.f32.mrb[0].mxu0
      %v546 = vpop.f32.mrb[0].mxu0
      %v547 = vpop.f32.mrb[0].mxu0
      %548 = vdwg.mxu0
      %s549 = scalar_lea.vmem %s9, 8
      %v550 = vld [vmem:[%s549] sm:$0xff]
      %551 = vrot.lane.b32.xlu0 %v436, 120
      %v552 = vpop.permute.xlu0 %551
      %553 = vrot.lane.b32.xlu0 %v436, 88
      %v554 = vpop.permute.xlu0 %553
      %v556 = vsel %vm441, %v552, 0
      %v559 = vsel %vm441, %v554, 0
      %561 = vmatprep.subr.bf16.mxu0 0
      %562 = vmatpush1.bf16.xpose.msra.mxu0 %v559
      %563 = vmatprep.subr.bf16.mxu0 0
      %564 = vmatpush1.bf16.xpose.msra.mxu0 0
      %565 = vmatprep.subr.bf16.mxu0 0
      %566 = vmatpush1.bf16.xpose.msra.mxu0 0
      %567 = vmatprep.subr.bf16.mxu0 0
      %568 = vmatpush1.bf16.xpose.msra.mxu0 0
      %569 = vmatprep.subr.bf16.mxu0 0
      %570 = vmatpush1.bf16.xpose.msra.mxu0 0
      %571 = vmatprep.subr.bf16.mxu0 0
      %572 = vmatpush1.bf16.xpose.msra.mxu0 0
      %573 = vmatprep.subr.bf16.mxu0 0
      %574 = vmatpush1.bf16.xpose.msra.mxu0 0
      %575 = vmatprep.subr.bf16.mxu0 0
      %576 = vmatpush1.bf16.xpose.msra.mxu0 0
      %577 = vmatprep.subr.bf16.mxu0 0
      %578 = vmatpush1.bf16.xpose.msra.mxu0 0
      %579 = vmatprep.subr.bf16.mxu0 0
      %580 = vmatpush1.bf16.xpose.msra.mxu0 0
      %581 = vmatprep.subr.bf16.mxu0 0
      %582 = vmatpush1.bf16.xpose.msra.mxu0 0
      %583 = vmatprep.subr.bf16.mxu0 0
      %584 = vmatpush1.bf16.xpose.msra.mxu0 0
      %585 = vmatprep.subr.bf16.mxu0 0
      %586 = vmatpush1.bf16.xpose.msra.mxu0 0
      %587 = vmatprep.subr.bf16.mxu0 0
      %588 = vmatpush1.bf16.xpose.msra.mxu0 0
      %589 = vmatprep.subr.bf16.mxu0 0
      %590 = vmatpush1.bf16.xpose.msra.mxu0 0
      %591 = vmatprep.subr.bf16.mxu0 0
      %592 = vmatpush1.bf16.xpose.msra.mxu0 0
      %593 = vmatprep.mubr.bf16.mxu0 0
      %594 = vmatmul.mubr.bf16.gmra.mrb[0].mxu0 %v556
      %v595 = vpop.f32.mrb[0].mxu0
      %v596 = vadd.f32 %v550, %v595
      %v597 = vpop.f32.mrb[0].mxu0
      %v598 = vpop.f32.mrb[0].mxu0
      %v599 = vpop.f32.mrb[0].mxu0
      %600 = vdwg.mxu0
      %v601 = vsel %vm441, %v596, -inf
      %602 = vmax.xlane.f32.xlu0 %v601
      %v603 = vpop.xlane.xlu0 %602
      %v604 = vsub.f32 %v596, %v603
      %v605 = vmul.f32 %v604, 1.442695
      %v606 = vpow.pop %v605
      %v607 = vsel %vm441, %v606, 0.0
      %608 = vadd.xlane.f32.xlu0 %v607
      %v609 = vpop.xlane.xlu0 %608
      %v610 = vrcp.pop %v609
      %v611 = vmul.f32 %v606, %v610
      %v612 = vpack.c.bf16 %v611, %v611
      %613 = vrot.lane.b32.xlu0 %v436, 56
      %v614 = vpop.permute.xlu0 %613
      %v616 = vsel %vm441, %v612, 0
      %v619 = vsel %vm505, %v614, 0
      %621 = vmatprep.subr.bf16.mxu0 0
      %622 = vmatpush1.bf16.msra.mxu0 %v619
      %623 = vmatprep.subr.bf16.mxu0 0
      %624 = vmatpush1.bf16.msra.mxu0 0
      %625 = vmatprep.subr.bf16.mxu0 0
      %626 = vmatpush1.bf16.msra.mxu0 0
      %627 = vmatprep.subr.bf16.mxu0 0
      %628 = vmatpush1.bf16.msra.mxu0 0
      %629 = vmatprep.subr.bf16.mxu0 0
      %630 = vmatpush1.bf16.msra.mxu0 0
      %631 = vmatprep.subr.bf16.mxu0 0
      %632 = vmatpush1.bf16.msra.mxu0 0
      %633 = vmatprep.subr.bf16.mxu0 0
      %634 = vmatpush1.bf16.msra.mxu0 0
      %635 = vmatprep.subr.bf16.mxu0 0
      %636 = vmatpush1.bf16.msra.mxu0 0
      %637 = vmatprep.subr.bf16.mxu0 0
      %638 = vmatpush1.bf16.msra.mxu0 0
      %639 = vmatprep.subr.bf16.mxu0 0
      %640 = vmatpush1.bf16.msra.mxu0 0
      %641 = vmatprep.subr.bf16.mxu0 0
      %642 = vmatpush1.bf16.msra.mxu0 0
      %643 = vmatprep.subr.bf16.mxu0 0
      %644 = vmatpush1.bf16.msra.mxu0 0
      %645 = vmatprep.subr.bf16.mxu0 0
      %646 = vmatpush1.bf16.msra.mxu0 0
      %647 = vmatprep.subr.bf16.mxu0 0
      %648 = vmatpush1.bf16.msra.mxu0 0
      %649 = vmatprep.subr.bf16.mxu0 0
      %650 = vmatpush1.bf16.msra.mxu0 0
      %651 = vmatprep.subr.bf16.mxu0 0
      %652 = vmatpush1.bf16.msra.mxu0 0
      %653 = vmatprep.mubr.bf16.mxu0 0
      %654 = vmatmul.mubr.bf16.gmra.mrb[0].mxu0 %v616
      %v655 = vpop.f32.mrb[0].mxu0
      %v656 = vadd.f32 0.0, %v655
      %v657 = vpop.f32.mrb[0].mxu0
      %v658 = vpop.f32.mrb[0].mxu0
      %v659 = vpop.f32.mrb[0].mxu0
      %660 = vdwg.mxu0
      %s661 = scalar_lea.vmem %s9, 16
      %v662 = vld [vmem:[%s661] sm:$0xff]
      %663 = vrot.lane.b32.xlu0 %v436, 112
      %v664 = vpop.permute.xlu0 %663
      %665 = vrot.lane.b32.xlu0 %v436, 80
      %v666 = vpop.permute.xlu0 %665
      %v668 = vsel %vm441, %v664, 0
      %v671 = vsel %vm441, %v666, 0
      %673 = vmatprep.subr.bf16.mxu0 0
      %674 = vmatpush1.bf16.xpose.msra.mxu0 %v671
      %675 = vmatprep.subr.bf16.mxu0 0
      %676 = vmatpush1.bf16.xpose.msra.mxu0 0
      %677 = vmatprep.subr.bf16.mxu0 0
      %678 = vmatpush1.bf16.xpose.msra.mxu0 0
      %679 = vmatprep.subr.bf16.mxu0 0
      %680 = vmatpush1.bf16.xpose.msra.mxu0 0
      %681 = vmatprep.subr.bf16.mxu0 0
      %682 = vmatpush1.bf16.xpose.msra.mxu0 0
      %683 = vmatprep.subr.bf16.mxu0 0
      %684 = vmatpush1.bf16.xpose.msra.mxu0 0
      %685 = vmatprep.subr.bf16.mxu0 0
      %686 = vmatpush1.bf16.xpose.msra.mxu0 0
      %687 = vmatprep.subr.bf16.mxu0 0
      %688 = vmatpush1.bf16.xpose.msra.mxu0 0
      %689 = vmatprep.subr.bf16.mxu0 0
      %690 = vmatpush1.bf16.xpose.msra.mxu0 0
      %691 = vmatprep.subr.bf16.mxu0 0
      %692 = vmatpush1.bf16.xpose.msra.mxu0 0
      %693 = vmatprep.subr.bf16.mxu0 0
      %694 = vmatpush1.bf16.xpose.msra.mxu0 0
      %695 = vmatprep.subr.bf16.mxu0 0
      %696 = vmatpush1.bf16.xpose.msra.mxu0 0
      %697 = vmatprep.subr.bf16.mxu0 0
      %698 = vmatpush1.bf16.xpose.msra.mxu0 0
      %699 = vmatprep.subr.bf16.mxu0 0
      %700 = vmatpush1.bf16.xpose.msra.mxu0 0
      %701 = vmatprep.subr.bf16.mxu0 0
      %702 = vmatpush1.bf16.xpose.msra.mxu0 0
      %703 = vmatprep.subr.bf16.mxu0 0
      %704 = vmatpush1.bf16.xpose.msra.mxu0 0
      %705 = vmatprep.mubr.bf16.mxu0 0
      %706 = vmatmul.mubr.bf16.gmra.mrb[0].mxu0 %v668
      %v707 = vpop.f32.mrb[0].mxu0
      %v708 = vadd.f32 %v662, %v707
      %v709 = vpop.f32.mrb[0].mxu0
      %v710 = vpop.f32.mrb[0].mxu0
      %v711 = vpop.f32.mrb[0].mxu0
      %712 = vdwg.mxu0
      %v713 = vsel %vm441, %v708, -inf
      %714 = vmax.xlane.f32.xlu0 %v713
      %v715 = vpop.xlane.xlu0 %714
      %v716 = vsub.f32 %v708, %v715
      %v717 = vmul.f32 %v716, 1.442695
      %v718 = vpow.pop %v717
      %v719 = vsel %vm441, %v718, 0.0
      %720 = vadd.xlane.f32.xlu0 %v719
      %v721 = vpop.xlane.xlu0 %720
      %v722 = vrcp.pop %v721
      %v723 = vmul.f32 %v718, %v722
      %v724 = vpack.c.bf16 %v723, %v723
      %725 = vrot.lane.b32.xlu0 %v436, 48
      %v726 = vpop.permute.xlu0 %725
      %v728 = vsel %vm441, %v724, 0
      %v731 = vsel %vm505, %v726, 0
      %733 = vmatprep.subr.bf16.mxu0 0
      %734 = vmatpush1.bf16.msra.mxu0 %v731
      %735 = vmatprep.subr.bf16.mxu0 0
      %736 = vmatpush1.bf16.msra.mxu0 0
      %737 = vmatprep.subr.bf16.mxu0 0
      %738 = vmatpush1.bf16.msra.mxu0 0
      %739 = vmatprep.subr.bf16.mxu0 0
      %740 = vmatpush1.bf16.msra.mxu0 0
      %741 = vmatprep.subr.bf16.mxu0 0
      %742 = vmatpush1.bf16.msra.mxu0 0
      %743 = vmatprep.subr.bf16.mxu0 0
      %744 = vmatpush1.bf16.msra.mxu0 0
      %745 = vmatprep.subr.bf16.mxu0 0
      %746 = vmatpush1.bf16.msra.mxu0 0
      %747 = vmatprep.subr.bf16.mxu0 0
      %748 = vmatpush1.bf16.msra.mxu0 0
      %749 = vmatprep.subr.bf16.mxu0 0
      %750 = vmatpush1.bf16.msra.mxu0 0
      %751 = vmatprep.subr.bf16.mxu0 0
      %752 = vmatpush1.bf16.msra.mxu0 0
      %753 = vmatprep.subr.bf16.mxu0 0
      %754 = vmatpush1.bf16.msra.mxu0 0
      %755 = vmatprep.subr.bf16.mxu0 0
      %756 = vmatpush1.bf16.msra.mxu0 0
      %757 = vmatprep.subr.bf16.mxu0 0
      %758 = vmatpush1.bf16.msra.mxu0 0
      %759 = vmatprep.subr.bf16.mxu0 0
      %760 = vmatpush1.bf16.msra.mxu0 0
      %761 = vmatprep.subr.bf16.mxu0 0
      %762 = vmatpush1.bf16.msra.mxu0 0
      %763 = vmatprep.subr.bf16.mxu0 0
      %764 = vmatpush1.bf16.msra.mxu0 0
      %765 = vmatprep.mubr.bf16.mxu0 0
      %766 = vmatmul.mubr.bf16.gmra.mrb[0].mxu0 %v728
      %v767 = vpop.f32.mrb[0].mxu0
      %v768 = vadd.f32 0.0, %v767
      %v769 = vpop.f32.mrb[0].mxu0
      %v770 = vpop.f32.mrb[0].mxu0
      %v771 = vpop.f32.mrb[0].mxu0
      %772 = vdwg.mxu0
      %s773 = scalar_lea.vmem %s9, 24
      %v774 = vld [vmem:[%s773] sm:$0xff]
      %775 = vrot.lane.b32.xlu0 %v436, 104
      %v776 = vpop.permute.xlu0 %775
      %777 = vrot.lane.b32.xlu0 %v436, 72
      %v778 = vpop.permute.xlu0 %777
      %v780 = vsel %vm441, %v776, 0
      %v783 = vsel %vm441, %v778, 0
      %785 = vmatprep.subr.bf16.mxu0 0
      %786 = vmatpush1.bf16.xpose.msra.mxu0 %v783
      %787 = vmatprep.subr.bf16.mxu0 0
      %788 = vmatpush1.bf16.xpose.msra.mxu0 0
      %789 = vmatprep.subr.bf16.mxu0 0
      %790 = vmatpush1.bf16.xpose.msra.mxu0 0
      %791 = vmatprep.subr.bf16.mxu0 0
      %792 = vmatpush1.bf16.xpose.msra.mxu0 0
      %793 = vmatprep.subr.bf16.mxu0 0
      %794 = vmatpush1.bf16.xpose.msra.mxu0 0
      %795 = vmatprep.subr.bf16.mxu0 0
      %796 = vmatpush1.bf16.xpose.msra.mxu0 0
      %797 = vmatprep.subr.bf16.mxu0 0
      %798 = vmatpush1.bf16.xpose.msra.mxu0 0
      %799 = vmatprep.subr.bf16.mxu0 0
      %800 = vmatpush1.bf16.xpose.msra.mxu0 0
      %801 = vmatprep.subr.bf16.mxu0 0
      %802 = vmatpush1.bf16.xpose.msra.mxu0 0
      %803 = vmatprep.subr.bf16.mxu0 0
      %804 = vmatpush1.bf16.xpose.msra.mxu0 0
      %805 = vmatprep.subr.bf16.mxu0 0
      %806 = vmatpush1.bf16.xpose.msra.mxu0 0
      %807 = vmatprep.subr.bf16.mxu0 0
      %808 = vmatpush1.bf16.xpose.msra.mxu0 0
      %809 = vmatprep.subr.bf16.mxu0 0
      %810 = vmatpush1.bf16.xpose.msra.mxu0 0
      %811 = vmatprep.subr.bf16.mxu0 0
      %812 = vmatpush1.bf16.xpose.msra.mxu0 0
      %813 = vmatprep.subr.bf16.mxu0 0
      %814 = vmatpush1.bf16.xpose.msra.mxu0 0
      %815 = vmatprep.subr.bf16.mxu0 0
      %816 = vmatpush1.bf16.xpose.msra.mxu0 0
      %817 = vmatprep.mubr.bf16.mxu0 0
      %818 = vmatmul.mubr.bf16.gmra.mrb[0].mxu0 %v780
      %v819 = vpop.f32.mrb[0].mxu0
      %v820 = vadd.f32 %v774, %v819
      %v821 = vpop.f32.mrb[0].mxu0
      %v822 = vpop.f32.mrb[0].mxu0
      %v823 = vpop.f32.mrb[0].mxu0
      %824 = vdwg.mxu0
      %v825 = vsel %vm441, %v820, -inf
      %826 = vmax.xlane.f32.xlu0 %v825
      %v827 = vpop.xlane.xlu0 %826
      %v828 = vsub.f32 %v820, %v827
      %v829 = vmul.f32 %v828, 1.442695
      %v830 = vpow.pop %v829
      %v831 = vsel %vm441, %v830, 0.0
      %832 = vadd.xlane.f32.xlu0 %v831
      %v833 = vpop.xlane.xlu0 %832
      %v834 = vrcp.pop %v833
      %v835 = vmul.f32 %v830, %v834
      %v836 = vpack.c.bf16 %v835, %v835
      %837 = vrot.lane.b32.xlu0 %v436, 40
      %v838 = vpop.permute.xlu0 %837
      %v840 = vsel %vm441, %v836, 0
      %v843 = vsel %vm505, %v838, 0
      %845 = vmatprep.subr.bf16.mxu0 0
      %846 = vmatpush1.bf16.msra.mxu0 %v843
      %847 = vmatprep.subr.bf16.mxu0 0
      %848 = vmatpush1.bf16.msra.mxu0 0
      %849 = vmatprep.subr.bf16.mxu0 0
      %850 = vmatpush1.bf16.msra.mxu0 0
      %851 = vmatprep.subr.bf16.mxu0 0
      %852 = vmatpush1.bf16.msra.mxu0 0
      %853 = vmatprep.subr.bf16.mxu0 0
      %854 = vmatpush1.bf16.msra.mxu0 0
      %855 = vmatprep.subr.bf16.mxu0 0
      %856 = vmatpush1.bf16.msra.mxu0 0
      %857 = vmatprep.subr.bf16.mxu0 0
      %858 = vmatpush1.bf16.msra.mxu0 0
      %859 = vmatprep.subr.bf16.mxu0 0
      %860 = vmatpush1.bf16.msra.mxu0 0
      %861 = vmatprep.subr.bf16.mxu0 0
      %862 = vmatpush1.bf16.msra.mxu0 0
      %863 = vmatprep.subr.bf16.mxu0 0
      %864 = vmatpush1.bf16.msra.mxu0 0
      %865 = vmatprep.subr.bf16.mxu0 0
      %866 = vmatpush1.bf16.msra.mxu0 0
      %867 = vmatprep.subr.bf16.mxu0 0
      %868 = vmatpush1.bf16.msra.mxu0 0
      %869 = vmatprep.subr.bf16.mxu0 0
      %870 = vmatpush1.bf16.msra.mxu0 0
      %871 = vmatprep.subr.bf16.mxu0 0
      %872 = vmatpush1.bf16.msra.mxu0 0
      %873 = vmatprep.subr.bf16.mxu0 0
      %874 = vmatpush1.bf16.msra.mxu0 0
      %875 = vmatprep.subr.bf16.mxu0 0
      %876 = vmatpush1.bf16.msra.mxu0 0
      %877 = vmatprep.mubr.bf16.mxu0 0
      %878 = vmatmul.mubr.bf16.gmra.mrb[0].mxu0 %v840
      %v879 = vpop.f32.mrb[0].mxu0
      %v880 = vadd.f32 0.0, %v879
      %v881 = vpop.f32.mrb[0].mxu0
      %v882 = vpop.f32.mrb[0].mxu0
      %v883 = vpop.f32.mrb[0].mxu0
      %884 = vdwg.mxu0
      %886 = vrot.lane.b32.xlu0 %v656, 8
      %v887 = vpop.permute.xlu0 %886
      %890 = vrot.lane.b32.xlu0 %v768, 16
      %v891 = vpop.permute.xlu0 %890
      %894 = vrot.lane.b32.xlu0 %v880, 24
      %v895 = vpop.permute.xlu0 %894
      %v897 = vsel %vm441, %v544, %v887
      %vm898 = vcmask 130048
      %v899 = vsel %vm898, %v897, %v891
      %vm900 = vcmask 195584
      %v901 = vsel %vm900, %v899, %v895
      %v902 = vpack.c.bf16 %v901, %v901
      %v903 = vld [vmem:[%s3] sm:$0xf]
      %v904 = vld [vmem:[%s3 + $0x4] sm:$0xf]
      %v905 = vld [vmem:[%s3 + $0x8] sm:$0xf]
      %v906 = vld [vmem:[%s3 + $0xc] sm:$0xf]
      %v911 = vunpack.c.l.b16 %v903
      %v912 = vunpack.c.l.b16 %v904
      %v913 = vunpack.c.l.b16 %v905
      %v914 = vunpack.c.l.b16 %v906
      %v915 = vpack.c.b16 %v912, %v911
      %v916 = vpack.c.b16 %v914, %v913
      %v920 = vsel %vm359, %v902, 0
      %922 = vmatprep.subr.bf16.mxu0 0
      %923 = vmatpush1.bf16.msra.mxu0 %v915
      %924 = vmatprep.subr.bf16.mxu0 0
      %925 = vmatpush1.bf16.msra.mxu0 %v916
      %926 = vmatprep.subr.bf16.mxu0 0
      %927 = vmatpush1.bf16.msra.mxu0 0
      %928 = vmatprep.subr.bf16.mxu0 0
      %929 = vmatpush1.bf16.msra.mxu0 0
      %930 = vmatprep.subr.bf16.mxu0 0
      %931 = vmatpush1.bf16.msra.mxu0 0
      %932 = vmatprep.subr.bf16.mxu0 0
      %933 = vmatpush1.bf16.msra.mxu0 0
      %934 = vmatprep.subr.bf16.mxu0 0
      %935 = vmatpush1.bf16.msra.mxu0 0
      %936 = vmatprep.subr.bf16.mxu0 0
      %937 = vmatpush1.bf16.msra.mxu0 0
      %938 = vmatprep.subr.bf16.mxu0 0
      %939 = vmatpush1.bf16.msra.mxu0 0
      %940 = vmatprep.subr.bf16.mxu0 0
      %941 = vmatpush1.bf16.msra.mxu0 0
      %942 = vmatprep.subr.bf16.mxu0 0
      %943 = vmatpush1.bf16.msra.mxu0 0
      %944 = vmatprep.subr.bf16.mxu0 0
      %945 = vmatpush1.bf16.msra.mxu0 0
      %946 = vmatprep.subr.bf16.mxu0 0
      %947 = vmatpush1.bf16.msra.mxu0 0
      %948 = vmatprep.subr.bf16.mxu0 0
      %949 = vmatpush1.bf16.msra.mxu0 0
      %950 = vmatprep.subr.bf16.mxu0 0
      %951 = vmatpush1.bf16.msra.mxu0 0
      %952 = vmatprep.subr.bf16.mxu0 0
      %953 = vmatpush1.bf16.msra.mxu0 0
      %954 = vmatprep.mubr.bf16.mxu0 0
      %955 = vmatmul.mubr.bf16.gmra.mrb[0].mxu0 %v920
      %v956 = vpop.f32.mrb[0].mxu0
      %v957 = vadd.f32 0.0, %v956
      %v958 = vpop.f32.mrb[0].mxu0
      %v959 = vpop.f32.mrb[0].mxu0
      %v960 = vpop.f32.mrb[0].mxu0
      %961 = vdwg.mxu0
      %v962 = vadd.f32 %v357, %v957
      %v963 = vmul.f32 %v962, %v962
      %v964 = vsel %vm359, %v963, 0.0
      %965 = vadd.xlane.f32.xlu0 %v964
      %v966 = vpop.xlane.xlu0 %965
      %v967 = vmul.f32 %v966, %v363
      %v968 = vadd.f32 %v967, 1e-06
      %v969 = vrsqrt.pop %v968
      %v970 = vmul.f32 %v962, %v969
      %v971 = vld [vmem:[%s4] sm:$0x1]
      %v973 = vlaneseq
      %v974 = vshrl.u32 %v973, 7
      %v975 = vsub.s32 0, %v974
      %v976 = vrot.slane %v971, %v975
      %v978 = vmul.f32 %v970, %v976
      %v979 = vpack.c.bf16 %v978, %v978
      %v980 = vld [vmem:[%s5] sm:$0xf]
      %v981 = vld [vmem:[%s5 + $0x4] sm:$0xf]
      %v982 = vld [vmem:[%s5 + $0x8] sm:$0xf]
      %v983 = vld [vmem:[%s5 + $0xc] sm:$0xf]
      %v988 = vunpack.c.l.b16 %v980
      %v989 = vunpack.c.l.b16 %v981
      %v990 = vunpack.c.l.b16 %v982
      %v991 = vunpack.c.l.b16 %v983
      %v992 = vpack.c.b16 %v989, %v988
      %v993 = vpack.c.b16 %v991, %v990
      %v997 = vsel %vm359, %v979, 0
      %999 = vmatprep.subr.bf16.mxu0 0
      %1000 = vmatpush1.bf16.msra.mxu0 %v992
      %1001 = vmatprep.subr.bf16.mxu0 0
      %1002 = vmatpush1.bf16.msra.mxu0 %v993
      %1003 = vmatprep.subr.bf16.mxu0 0
      %1004 = vmatpush1.bf16.msra.mxu0 0
      %1005 = vmatprep.subr.bf16.mxu0 0
      %1006 = vmatpush1.bf16.msra.mxu0 0
      %1007 = vmatprep.subr.bf16.mxu0 0
      %1008 = vmatpush1.bf16.msra.mxu0 0
      %1009 = vmatprep.subr.bf16.mxu0 0
      %1010 = vmatpush1.bf16.msra.mxu0 0
      %1011 = vmatprep.subr.bf16.mxu0 0
      %1012 = vmatpush1.bf16.msra.mxu0 0
      %1013 = vmatprep.subr.bf16.mxu0 0
      %1014 = vmatpush1.bf16.msra.mxu0 0
      %1015 = vmatprep.subr.bf16.mxu0 0
      %1016 = vmatpush1.bf16.msra.mxu0 0
      %1017 = vmatprep.subr.bf16.mxu0 0
      %1018 = vmatpush1.bf16.msra.mxu0 0
      %1019 = vmatprep.subr.bf16.mxu0 0
      %1020 = vmatpush1.bf16.msra.mxu0 0
      %1021 = vmatprep.subr.bf16.mxu0 0
      %1022 = vmatpush1.bf16.msra.mxu0 0
      %1023 = vmatprep.subr.bf16.mxu0 0
      %1024 = vmatpush1.bf16.msra.mxu0 0
      %1025 = vmatprep.subr.bf16.mxu0 0
      %1026 = vmatpush1.bf16.msra.mxu0 0
      %1027 = vmatprep.subr.bf16.mxu0 0
      %1028 = vmatpush1.bf16.msra.mxu0 0
      %1029 = vmatprep.subr.bf16.mxu0 0
      %1030 = vmatpush1.bf16.msra.mxu0 0
      %1031 = vmatprep.mubr.bf16.mxu0 0
      %1032 = vmatmul.mubr.bf16.gmra.mrb[0].mxu0 %v997
      %v1033 = vpop.f32.mrb[0].mxu0
      %v1034 = vadd.f32 0.0, %v1033
      %v1035 = vpop.f32.mrb[0].mxu0
      %v1036 = vpop.f32.mrb[0].mxu0
      %v1037 = vpop.f32.mrb[0].mxu0
      %1038 = vdwg.mxu0
      %v1039 = vmax.f32 %v1034, 0.0
      %v1040 = vpack.c.bf16 %v1039, %v1039
      %v1041 = vld [vmem:[%s6] sm:$0xf]
      %v1042 = vld [vmem:[%s6 + $0x4] sm:$0xf]
      %v1043 = vld [vmem:[%s6 + $0x8] sm:$0xf]
      %v1044 = vld [vmem:[%s6 + $0xc] sm:$0xf]
      %v1045 = vld [vmem:[%s6 + $0x10] sm:$0xf]
      %v1046 = vld [vmem:[%s6 + $0x14] sm:$0xf]
      %v1047 = vld [vmem:[%s6 + $0x18] sm:$0xf]
      %v1048 = vld [vmem:[%s6 + $0x1c] sm:$0xf]
      %v1057 = vunpack.c.l.b16 %v1041
      %v1058 = vunpack.c.l.b16 %v1042
      %v1059 = vunpack.c.l.b16 %v1043
      %v1060 = vunpack.c.l.b16 %v1044
      %v1061 = vunpack.c.l.b16 %v1045
      %v1062 = vunpack.c.l.b16 %v1046
      %v1063 = vunpack.c.l.b16 %v1047
      %v1064 = vunpack.c.l.b16 %v1048
      %v1065 = vpack.c.b16 %v1058, %v1057
      %v1066 = vpack.c.b16 %v1060, %v1059
      %v1067 = vpack.c.b16 %v1062, %v1061
      %v1068 = vpack.c.b16 %v1064, %v1063
      %vm1073 = vcmask 523264
      %v1075 = vsel %vm1073, %v1040, 0
      %1077 = vmatprep.subr.bf16.mxu0 0
      %1078 = vmatpush1.bf16.msra.mxu0 %v1065
      %1079 = vmatprep.subr.bf16.mxu0 0
      %1080 = vmatpush1.bf16.msra.mxu0 %v1066
      %1081 = vmatprep.subr.bf16.mxu0 0
      %1082 = vmatpush1.bf16.msra.mxu0 %v1067
      %1083 = vmatprep.subr.bf16.mxu0 0
      %1084 = vmatpush1.bf16.msra.mxu0 %v1068
      %1085 = vmatprep.subr.bf16.mxu0 0
      %1086 = vmatpush1.bf16.msra.mxu0 0
      %1087 = vmatprep.subr.bf16.mxu0 0
      %1088 = vmatpush1.bf16.msra.mxu0 0
      %1089 = vmatprep.subr.bf16.mxu0 0
      %1090 = vmatpush1.bf16.msra.mxu0 0
      %1091 = vmatprep.subr.bf16.mxu0 0
      %1092 = vmatpush1.bf16.msra.mxu0 0
      %1093 = vmatprep.subr.bf16.mxu0 0
      %1094 = vmatpush1.bf16.msra.mxu0 0
      %1095 = vmatprep.subr.bf16.mxu0 0
      %1096 = vmatpush1.bf16.msra.mxu0 0
      %1097 = vmatprep.subr.bf16.mxu0 0
      %1098 = vmatpush1.bf16.msra.mxu0 0
      %1099 = vmatprep.subr.bf16.mxu0 0
      %1100 = vmatpush1.bf16.msra.mxu0 0
      %1101 = vmatprep.subr.bf16.mxu0 0
      %1102 = vmatpush1.bf16.msra.mxu0 0
      %1103 = vmatprep.subr.bf16.mxu0 0
      %1104 = vmatpush1.bf16.msra.mxu0 0
      %1105 = vmatprep.subr.bf16.mxu0 0
      %1106 = vmatpush1.bf16.msra.mxu0 0
      %1107 = vmatprep.subr.bf16.mxu0 0
      %1108 = vmatpush1.bf16.msra.mxu0 0
      %1109 = vmatprep.mubr.bf16.mxu0 0
      %1110 = vmatmul.mubr.bf16.gmra.mrb[0].mxu0 %v1075
      %v1111 = vpop.f32.mrb[0].mxu0
      %v1112 = vadd.f32 0.0, %v1111
      %v1113 = vpop.f32.mrb[0].mxu0
      %v1114 = vpop.f32.mrb[0].mxu0
      %v1115 = vpop.f32.mrb[0].mxu0
      %1116 = vdwg.mxu0
      %v1117 = vadd.f32 %v962, %v1112
      %v1118 = vmul.f32 %v1117, %v1117
      %v1119 = vsel %vm359, %v1118, 0.0
      %1120 = vadd.xlane.f32.xlu0 %v1119
      %v1121 = vpop.xlane.xlu0 %1120
      %v1122 = vmul.f32 %v1121, %v363
      %v1123 = vadd.f32 %v1122, 1e-06
      %v1124 = vrsqrt.pop %v1123
      %v1125 = vmul.f32 %v1117, %v1124
      %v1126 = vld [vmem:[%s7] sm:$0x1]
      %v1128 = vlaneseq
      %v1129 = vshrl.u32 %v1128, 7
      %v1130 = vsub.s32 0, %v1129
      %v1131 = vrot.slane %v1126, %v1130
      %v1133 = vmul.f32 %v1125, %v1131
      %v1134 = vmul.f32 %v1133, 0.17677669
      %v1135 = vpack.c.bf16 %v1134, %v1134
      %v1136 = vld [vmem:[%s8] sm:$0xf]
      %v1137 = vld [vmem:[%s8 + $0x4] sm:$0xf]
      %v1138 = vld [vmem:[%s8 + $0x8] sm:$0xf]
      %v1139 = vld [vmem:[%s8 + $0xc] sm:$0xf]
      %v1144 = vunpack.c.l.b16 %v1136
      %v1145 = vunpack.c.l.b16 %v1137
      %v1146 = vunpack.c.l.b16 %v1138
      %v1147 = vunpack.c.l.b16 %v1139
      %v1148 = vpack.c.b16 %v1145, %v1144
      %v1149 = vpack.c.b16 %v1147, %v1146
      %v1153 = vsel %vm359, %v1135, 0
      %1155 = vmatprep.subr.bf16.mxu0 0
      %1156 = vmatpush1.bf16.msra.mxu0 %v1148
      %1157 = vmatprep.subr.bf16.mxu0 0
      %1158 = vmatpush1.bf16.msra.mxu0 %v1149
      %1159 = vmatprep.subr.bf16.mxu0 0
      %1160 = vmatpush1.bf16.msra.mxu0 0
      %1161 = vmatprep.subr.bf16.mxu0 0
      %1162 = vmatpush1.bf16.msra.mxu0 0
      %1163 = vmatprep.subr.bf16.mxu0 0
      %1164 = vmatpush1.bf16.msra.mxu0 0
      %1165 = vmatprep.subr.bf16.mxu0 0
      %1166 = vmatpush1.bf16.msra.mxu0 0
      %1167 = vmatprep.subr.bf16.mxu0 0
      %1168 = vmatpush1.bf16.msra.mxu0 0
      %1169 = vmatprep.subr.bf16.mxu0 0
      %1170 = vmatpush1.bf16.msra.mxu0 0
      %1171 = vmatprep.subr.bf16.mxu0 0
      %1172 = vmatpush1.bf16.msra.mxu0 0
      %1173 = vmatprep.subr.bf16.mxu0 0
      %1174 = vmatpush1.bf16.msra.mxu0 0
      %1175 = vmatprep.subr.bf16.mxu0 0
      %1176 = vmatpush1.bf16.msra.mxu0 0
      %1177 = vmatprep.subr.bf16.mxu0 0
      %1178 = vmatpush1.bf16.msra.mxu0 0
      %1179 = vmatprep.subr.bf16.mxu0 0
      %1180 = vmatpush1.bf16.msra.mxu0 0
      %1181 = vmatprep.subr.bf16.mxu0 0
      %1182 = vmatpush1.bf16.msra.mxu0 0
      %1183 = vmatprep.subr.bf16.mxu0 0
      %1184 = vmatpush1.bf16.msra.mxu0 0
      %1185 = vmatprep.subr.bf16.mxu0 0
      %1186 = vmatpush1.bf16.msra.mxu0 0
      %1187 = vmatprep.mubr.bf16.mxu0 0
      %1188 = vmatmul.mubr.bf16.gmra.mrb[0].mxu0 %v1153
      %v1189 = vpop.f32.mrb[0].mxu0
      %v1190 = vadd.f32 0.0, %v1189
      %v1191 = vpop.f32.mrb[0].mxu0
      %v1192 = vpop.f32.mrb[0].mxu0
      %v1193 = vpop.f32.mrb[0].mxu0
      %1194 = vdwg.mxu0
      %1195 = vst [vmem:[%s354] sm:$0xff] %v1190
      %p1196 = scmp.lt.s32.totalorder %s21, 1
      %s1197 = scalar_select %p1196, %s21, 1
      %s1198 = smul.addr %s1197, 8
      %s1199 = scalar_lea.vmem %s10, %s1198
      // Predicated region
      $region61: #{forward.1} parent=59 // pred_check
        %p1200 = pneg %p254
      $region62: #{forward.1} parent=59 // pred_check_branch
        %1202 = sbr.rel (%p1200) target = $region64
      $region63: #{forward.1} parent=59 // pred_region
        _
      $region64: #{forward.1} parent=59 // pred_fallthru
        _
    $region60: #{forward.1} parent=5 // pred_fallthru
      _
    %p1203 = scmp.le.s32.totalorder 2, %s16
    // Predicated region
    $region65: #{forward.1} parent=5 // pred_check
      %p1204 = pneg %p1203
    $region66: #{forward.1} parent=5 // pred_check_branch
      %1206 = sbr.rel (%p1204) target = $region68
    $region67: #{forward.1} parent=5 // pred_region
      %s1207 = ssub.s32 %s16, 2
      // Predicated region
      $region69: #{forward.1} parent=67 // pred_check
        %p1208 = pneg %p260
      $region70: #{forward.1} parent=67 // pred_check_branch
        %1210 = sbr.rel (%p1208) target = $region72
      $region71: #{forward.1} parent=67 // pred_region
        %p1211 = scmp.lt.s32.totalorder %s22, 1
        %s1212 = scalar_select %p1211, %s22, 1
        %s1213 = smul.addr %s1212, 8
        %s1214 = scalar_lea.vmem %s10, %s1213
      $region72: #{forward.1} parent=67 // pred_fallthru
        _
    $region68: #{forward.1} parent=5 // pred_fallthru
      _
  $region6: #{forward.1} parent=0 // loop_footer
    %s20 = sadd.s32 1, %s16
  $region7: #{forward.1} parent=0 // loop_footer_branch
    %15 = sbr.rel target = $region3
  $region8: #{forward.1} parent=0 // loop_exit
    _

</llo_original>
